<compile_context>
chip_gen: v6e
topology: v6e:2x2x1
jax: 0.10.0
libtpu: 0.0.40
codegen_flags: <defaults>
</compile_context>

<pallas_src>
import numpy as np
import jax
import jax.numpy as jnp
from jax.experimental import pallas as pl
from jax.experimental.pallas import tpu as pltpu

# ----------------------------- config (small, deterministic) -----------------------------
NTYPES = ("a", "b")   # ntype_list
T = len(NTYPES)       # number of node types
N = 8                 # nodes per type
H = 32                # hidden_dim
OUT = 4               # out_dim
RAW = 16              # raw_dim
TRANS_NUM = 2         # args.trans_num
RF_NUM = 2            # args.rf_trans_num
TEMP = 1.0            # args.search_temp
NUM_TR_OPS = 5        # TRANS_OPTION
NUM_AGG_OPS = 3       # AGG_OPTION
NUM_TR2_OPS = 3       # TRANS_OPTION_2


# ------------------------------------ fused kernel ----------------------------------------
def fused_forward_kernel(tr_w_ref, agg_w_ref, rf_w_ref,            # SMEM mixture weights
                         x_ref, rfeat_ref, wvec_ref,               # VMEM activations/weights
                         wbig_ref, bbig_ref,
                         wp_ref, bp_ref,
                         wrf_ref, brf_ref, wg2_ref, bg2_ref,
                         wcls_ref, bcls_ref,
                         out_ref):
    """Whole Search_Network.forward in a single invocation.

    x_ref    : (T, N, H)            per-type node features
    wvec_ref : (TRANS_NUM, 4H)      softmaxed branch weights, lane-repeated x32
    wbig_ref : (TRANS_NUM, T, 3H, 4H) packed [linear | rel-linear | conv | rel-conv]
    bbig_ref : (TRANS_NUM, T, 1, 4H)  packed biases
    """
    # Boundary masks for conv1d(kernel=3, padding=1) over the node axis: the rolled
    # copies wrap, so zero row 0 of x_prev and row N-1 of x_next.
    row = jax.lax.broadcasted_iota(jnp.int32, (N, H), 0)
    keep_prev = row != 0
    keep_next = row != (N - 1)

    xs = [x_ref[t] for t in range(T)]                                # list of (N, H)

    # ---------------- TRANS_NUM TransOp layers (unrolled, data stays in VMEM) -------------
    for l in range(TRANS_NUM):
        w_id = tr_w_ref[l, 4]                                        # identity weight
        wv = wvec_ref[l:l + 1, :]                                    # (1, 4H)
        new_xs = []
        for t in range(T):
            xt = xs[t]
            # shifted copies via XLU roll + boundary zeroing
            x_prev = jnp.where(keep_prev, pltpu.roll(xt, 1, axis=0), 0.0)
            x_next = jnp.where(keep_next, pltpu.roll(xt, N - 1, axis=0), 0.0)
            xc = jnp.concatenate([x_prev, xt, x_next], axis=-1)      # (N, 3H)
            # one 96-deep, 128-lane matmul covers all four learned branches
            y = (jnp.dot(xc, wbig_ref[l, t], preferred_element_type=jnp.float32)
                 + bbig_ref[l, t])
            y = jnp.maximum(y, 0.0) * wv                             # (N, 4H)
            mixed = (y[:, 0:H] + y[:, H:2 * H] + y[:, 2 * H:3 * H] + y[:, 3 * H:4 * H]
                     + w_id * xt)
            new_xs.append(mixed)
        xs = new_xs

    # ---------------- raw-feature branch: pre_linear + RF_NUM Trans_op_2 layers -----------
    rf = (jnp.dot(rfeat_ref[...], wp_ref[...], preferred_element_type=jnp.float32)
          + bp_ref[...])                                             # (1, H)
    for i in range(RF_NUM):
        # fused [linear | conv (L=1 -> middle tap) | gate-linear1] matmul
        y = jnp.maximum(
            jnp.dot(rf, wrf_ref[i], preferred_element_type=jnp.float32) + brf_ref[i], 0.0)
        lin = y[:, 0:H]
        cv = y[:, H:2 * H]
        g1 = y[:, 2 * H:3 * H]
        g = jnp.maximum(
            jnp.dot(g1 * rf, wg2_ref[i], preferred_element_type=jnp.float32) + bg2_ref[i],
            0.0)
        rf = rf_w_ref[i, 0] * lin + rf_w_ref[i, 1] * cv + rf_w_ref[i, 2] * g

    # ---------------- Agg_Op (sum/mean/max) + raw-feature add + classifier ----------------
    ssum = jnp.sum(xs[0], axis=0, keepdims=True)
    smax = jnp.max(xs[0], axis=0, keepdims=True)
    for t in range(1, T):
        ssum = ssum + jnp.sum(xs[t], axis=0, keepdims=True)
        smax = jnp.maximum(smax, jnp.max(xs[t], axis=0, keepdims=True))
    c_sum = agg_w_ref[0] + agg_w_ref[1] * (1.0 / (T * N))            # fold sum+mean
    vec = c_sum * ssum + agg_w_ref[2] * smax + rf                    # (1, H)
    out_ref[...] = (jnp.dot(vec, wcls_ref[...], preferred_element_type=jnp.float32)
                    + bcls_ref[...])


# ------------------------------- one-time weight packing ----------------------------------
def pack_params(params):
    """Pre-transpose / pack all weights ONCE (not per forward call)."""
    z = jnp.zeros((H, H), jnp.float32)

    def conv_pack(W):  # (H_out, H_in, 3) -> (3*H_in, H_out), tap-major along contraction
        return jnp.transpose(W, (2, 1, 0)).reshape(3 * H, H)

    wbig, bbig = [], []
    for p in params["trans"]:
        wc = conv_pack(p["Wc"])
        wt, bt = [], []
        for t in range(T):
            lin_pad = jnp.concatenate([z, p["Wl"].T, z], axis=0)         # acts on middle slice
            rlin_pad = jnp.concatenate([z, p["Wrl"][t].T, z], axis=0)
            wcr = conv_pack(p["Wcr"][t])
            wt.append(jnp.concatenate([lin_pad, rlin_pad, wc, wcr], axis=1))   # (3H, 4H)
            bt.append(jnp.concatenate(
                [p["bl"], p["brl"][t], p["bc"], p["bcr"][t]]).reshape(1, 4 * H))
        wbig.append(jnp.stack(wt))
        bbig.append(jnp.stack(bt))

    return dict(
        tr_alphas=params["tr_alphas"],
        agg_alphas=params["agg_alphas"],
        tr_alphas_2=params["tr_alphas_2"],
        wbig=jnp.stack(wbig),                         # (TRANS_NUM, T, 3H, 4H)
        bbig=jnp.stack(bbig),                         # (TRANS_NUM, T, 1, 4H)
        WpT=params["Wp"].T,                           # (RAW, H)
        bp=params["bp"].reshape(1, H),
        wrf=jnp.stack([jnp.concatenate(
            [q["Wlin"].T, q["Wconv"][:, :, 1].T, q["Wg1"].T], axis=1)
            for q in params["rf"]]),                  # (RF_NUM, H, 3H)
        brf=jnp.stack([jnp.concatenate(
            [q["blin"], q["bconv"], q["bg1"]]).reshape(1, 3 * H)
            for q in params["rf"]]),                  # (RF_NUM, 1, 3H)
        wg2=jnp.stack([q["Wg2"].T for q in params["rf"]]),             # (RF_NUM, H, H)
        bg2=jnp.stack([q["bg2"].reshape(1, H) for q in params["rf"]]), # (RF_NUM, 1, H)
        WclsT=params["Wcls"].T,                       # (H, OUT)
        bcls=params["bcls"].reshape(1, OUT),
    )


# ------------------------------------ forward wrapper -------------------------------------
_SMEM = pl.BlockSpec(memory_space=pltpu.MemorySpace.SMEM)
_VMEM = pl.BlockSpec(memory_space=pltpu.MemorySpace.VMEM)


@jax.jit
def search_network_forward(packed, x_stacked, r_feat):
    # architecture-weight softmaxes (tiny glue)
    tr_w = jax.nn.softmax(packed["tr_alphas"] / TEMP, axis=-1)         # (TRANS_NUM, 5)
    agg_w = jax.nn.softmax(packed["agg_alphas"] / TEMP, axis=-1)[0]    # (3,)
    tr_w2 = jax.nn.softmax(packed["tr_alphas_2"] / TEMP, axis=-1)      # (RF_NUM, 3)
    wvec = jnp.repeat(tr_w[:, :4], H, axis=1)                          # (TRANS_NUM, 4H)

    out = pl.pallas_call(
        fused_forward_kernel,
        out_shape=jax.ShapeDtypeStruct((1, OUT), jnp.float32),
        in_specs=[_SMEM, _SMEM, _SMEM] + [_VMEM] * 13,
        out_specs=_VMEM,
    )(tr_w, agg_w, tr_w2,
      x_stacked, r_feat.reshape(1, RAW), wvec,
      packed["wbig"], packed["bbig"],
      packed["WpT"], packed["bp"],
      packed["wrf"], packed["brf"], packed["wg2"], packed["bg2"],
      packed["WclsT"], packed["bcls"])
    return out[0]


# --------------------------------- pure-JAX reference --------------------------------------
def _ref_conv_nodes(x, W, b):
    n = x.shape[0]
    xp = jnp.pad(x, ((1, 1), (0, 0)))
    return (xp[0:n] @ W[:, :, 0].T + xp[1:n + 1] @ W[:, :, 1].T
            + xp[2:n + 2] @ W[:, :, 2].T + b)


def ref_forward(data_dict, r_feat, params):
    tr_w = jax.nn.softmax(params["tr_alphas"] / TEMP, axis=-1)
    agg_w = jax.nn.softmax(params["agg_alphas"] / TEMP, axis=-1)
    tr_w2 = jax.nn.softmax(params["tr_alphas_2"] / TEMP, axis=-1)
    d = {t: data_dict[t] for t in NTYPES}
    for i in range(TRANS_NUM):
        p, w = params["trans"][i], tr_w[i]
        nd = {}
        for ti, t in enumerate(NTYPES):
            x = d[t]
            lin = jax.nn.relu(x @ p["Wl"].T + p["bl"])
            rlin = jax.nn.relu(x @ p["Wrl"][ti].T + p["brl"][ti])
            cs = jax.nn.relu(_ref_conv_nodes(x, p["Wc"], p["bc"]))
            cr = jax.nn.relu(_ref_conv_nodes(x, p["Wcr"][ti], p["bcr"][ti]))
            nd[t] = w[0] * lin + w[1] * rlin + w[2] * cs + w[3] * cr + w[4] * x
        d = nd
    allc = jnp.concatenate([d[t] for t in NTYPES], axis=0)
    agg = (agg_w[0, 0] * allc.sum(0) + agg_w[0, 1] * allc.mean(0)
           + agg_w[0, 2] * allc.max(0))
    rf = r_feat @ params["Wp"].T + params["bp"]
    for i in range(RF_NUM):
        q, w = params["rf"][i], tr_w2[i]
        lin = jax.nn.relu(rf @ q["Wlin"].T + q["blin"])
        cv = jax.nn.relu(rf @ q["Wconv"][:, :, 1].T + q["bconv"])
        g = jax.nn.relu((jax.nn.relu(rf @ q["Wg1"].T + q["bg1"]) * rf) @ q["Wg2"].T + q["bg2"])
        rf = w[0] * lin + w[1] * cv + w[2] * g
    agg = agg + rf
    return agg @ params["Wcls"].T + params["bcls"]


# ------------------------------------ parameters -------------------------------------------
def init_params(key):
    keys = iter(jax.random.split(key, 64))

    def rn(shape, scale=0.1):
        return scale * jax.random.normal(next(keys), shape, dtype=jnp.float32)

    params = {
        "tr_alphas": 0.001 * jax.random.normal(next(keys), (TRANS_NUM, NUM_TR_OPS), jnp.float32),
        "agg_alphas": 0.001 * jax.random.normal(next(keys), (1, NUM_AGG_OPS), jnp.float32),
        "tr_alphas_2": 0.001 * jax.random.normal(next(keys), (RF_NUM, NUM_TR2_OPS), jnp.float32),
    }
    params["trans"] = [dict(Wl=rn((H, H)), bl=rn((H,)),
                            Wrl=rn((T, H, H)), brl=rn((T, H)),
                            Wc=rn((H, H, 3)), bc=rn((H,)),
                            Wcr=rn((T, H, H, 3)), bcr=rn((T, H)))
                       for _ in range(TRANS_NUM)]
    params["Wp"] = rn((H, RAW))
    params["bp"] = rn((H,))
    params["rf"] = [dict(Wlin=rn((H, H)), blin=rn((H,)),
                         Wconv=rn((H, H, 3)), bconv=rn((H,)),
                         Wg1=rn((H, H)), bg1=rn((H,)),
                         Wg2=rn((H, H)), bg2=rn((H,)))
                    for _ in range(RF_NUM)]
    params["Wcls"] = rn((OUT, H))
    params["bcls"] = rn((OUT,))
    return params


# --------------------------------------- main ----------------------------------------------
if __name__ == "__main__":
    key = jax.random.PRNGKey(0)
    kp, kd, kr = jax.random.split(key, 3)
    params = init_params(kp)
    packed = pack_params(params)                      # one-time weight packing

    dkeys = jax.random.split(kd, T)
    data = {t: 0.1 * jax.random.normal(dkeys[i], (N, H), dtype=jnp.float32)
            for i, t in enumerate(NTYPES)}
    r_feat = 0.1 * jax.random.normal(kr, (RAW,), dtype=jnp.float32)

    x_stacked = jnp.stack([data[t] for t in NTYPES], axis=0)          # (T, N, H)
    out = search_network_forward(packed, x_stacked, r_feat)
    out = jax.block_until_ready(out)

    ref = ref_forward(data, r_feat, params)
    np.testing.assert_allclose(np.asarray(out), np.asarray(ref), rtol=1e-3, atol=1e-3)
    print("KERNEL_OK")
</pallas_src>

<mosaic_0001>
module attributes {stable_mosaic.version = 11 : i64} {
  func.func @fused_forward_kernel(%arg0: memref<2x5xf32, #tpu.memory_space<smem>>, %arg1: memref<3xf32, #tpu.memory_space<smem>>, %arg2: memref<2x3xf32, #tpu.memory_space<smem>>, %arg3: memref<2x8x32xf32, #tpu.memory_space<vmem>>, %arg4: memref<1x16xf32, #tpu.memory_space<vmem>>, %arg5: memref<2x128xf32, #tpu.memory_space<vmem>>, %arg6: memref<2x2x96x128xf32, #tpu.memory_space<vmem>>, %arg7: memref<2x2x1x128xf32, #tpu.memory_space<vmem>>, %arg8: memref<16x32xf32, #tpu.memory_space<vmem>>, %arg9: memref<1x32xf32, #tpu.memory_space<vmem>>, %arg10: memref<2x32x96xf32, #tpu.memory_space<vmem>>, %arg11: memref<2x1x96xf32, #tpu.memory_space<vmem>>, %arg12: memref<2x32x32xf32, #tpu.memory_space<vmem>>, %arg13: memref<2x1x32xf32, #tpu.memory_space<vmem>>, %arg14: memref<32x4xf32, #tpu.memory_space<vmem>>, %arg15: memref<1x4xf32, #tpu.memory_space<vmem>>, %arg16: memref<1x4xf32, #tpu.memory_space<vmem>>) attributes {dimension_semantics = [], scalar_prefetch = 0 : i64, scratch_operands = 0 : i64, tpu.core_type = #tpu.core_type<tc>} {
    %0 = tpu.iota {dimensions = array<i32: 0>} : vector<8x32xi32>
    %c0_i32 = arith.constant 0 : i32
    %1 = vector.broadcast %c0_i32 : i32 to vector<8x32xi32>
    %2 = arith.cmpi ne, %0, %1 : vector<8x32xi32>
    %c7_i32 = arith.constant 7 : i32
    %3 = vector.broadcast %c7_i32 : i32 to vector<8x32xi32>
    %4 = arith.cmpi ne, %0, %3 : vector<8x32xi32>
    %c0 = arith.constant 0 : index
    %c0_0 = arith.constant 0 : index
    %c0_1 = arith.constant 0 : index
    %5 = vector.load %arg3[%c0, %c0_0, %c0_1] : memref<2x8x32xf32, #tpu.memory_space<vmem>>, vector<1x8x32xf32>
    %6 = vector.shape_cast %5 : vector<1x8x32xf32> to vector<8x32xf32>
    %c1 = arith.constant 1 : index
    %c0_2 = arith.constant 0 : index
    %c0_3 = arith.constant 0 : index
    %7 = vector.load %arg3[%c1, %c0_2, %c0_3] : memref<2x8x32xf32, #tpu.memory_space<vmem>>, vector<1x8x32xf32>
    %8 = vector.shape_cast %7 : vector<1x8x32xf32> to vector<8x32xf32>
    %c0_4 = arith.constant 0 : index
    %c4 = arith.constant 4 : index
    %9 = memref.load %arg0[%c0_4, %c4] : memref<2x5xf32, #tpu.memory_space<smem>>
    %c0_5 = arith.constant 0 : index
    %c0_6 = arith.constant 0 : index
    %10 = vector.load %arg5[%c0_5, %c0_6] : memref<2x128xf32, #tpu.memory_space<vmem>>, vector<1x128xf32>
    %c1_i32 = arith.constant 1 : i32
    %11 = tpu.dynamic_rotate %6 by %c1_i32 dim 0 : vector<8x32xf32>, i32 -> vector<8x32xf32>
    %cst = arith.constant 0.000000e+00 : f32
    %12 = vector.broadcast %cst : f32 to vector<8x32xf32>
    %13 = arith.select %2, %11, %12 : vector<8x32xi1>, vector<8x32xf32>
    %c7_i32_7 = arith.constant 7 : i32
    %14 = tpu.dynamic_rotate %6 by %c7_i32_7 dim 0 : vector<8x32xf32>, i32 -> vector<8x32xf32>
    %cst_8 = arith.constant 0.000000e+00 : f32
    %15 = vector.broadcast %cst_8 : f32 to vector<8x32xf32>
    %16 = arith.select %4, %14, %15 : vector<8x32xi1>, vector<8x32xf32>
    %17 = tpu.concatenate %13, %6, %16 in 1 : vector<8x32xf32>, vector<8x32xf32>, vector<8x32xf32> -> vector<8x96xf32>
    %c0_9 = arith.constant 0 : index
    %c0_10 = arith.constant 0 : index
    %c0_11 = arith.constant 0 : index
    %c0_12 = arith.constant 0 : index
    %18 = vector.load %arg6[%c0_9, %c0_10, %c0_11, %c0_12] : memref<2x2x96x128xf32, #tpu.memory_space<vmem>>, vector<1x1x96x128xf32>
    %19 = vector.shape_cast %18 : vector<1x1x96x128xf32> to vector<96x128xf32>
    %cst_13 = arith.constant dense<0.000000e+00> : vector<8x128xf32>
    %20 = tpu.matmul %17, %19, %cst_13 {dimension_numbers = #tpu.dot_dimension_numbers<[1], [0], [0], [1], [0, 0, 1, 1], [], []>} : vector<8x96xf32>, vector<96x128xf32>, vector<8x128xf32> -> vector<8x128xf32>
    %c0_14 = arith.constant 0 : index
    %c0_15 = arith.constant 0 : index
    %c0_16 = arith.constant 0 : index
    %c0_17 = arith.constant 0 : index
    %21 = vector.load %arg7[%c0_14, %c0_15, %c0_16, %c0_17] : memref<2x2x1x128xf32, #tpu.memory_space<vmem>>, vector<1x1x1x128xf32>
    %22 = vector.shape_cast %21 : vector<1x1x1x128xf32> to vector<1x128xf32>
    %23 = vector.broadcast %22 : vector<1x128xf32> to vector<8x128xf32>
    %24 = arith.addf %20, %23 : vector<8x128xf32>
    %cst_18 = arith.constant 0.000000e+00 : f32
    %25 = vector.broadcast %cst_18 : f32 to vector<8x128xf32>
    %26 = arith.maximumf %24, %25 : vector<8x128xf32>
    %27 = vector.broadcast %10 : vector<1x128xf32> to vector<8x128xf32>
    %28 = arith.mulf %26, %27 : vector<8x128xf32>
    %29 = vector.extract_strided_slice %28 {offsets = [0, 0], sizes = [8, 32], strides = [1, 1]} : vector<8x128xf32> to vector<8x32xf32>
    %30 = vector.extract_strided_slice %28 {offsets = [0, 32], sizes = [8, 32], strides = [1, 1]} : vector<8x128xf32> to vector<8x32xf32>
    %31 = arith.addf %29, %30 : vector<8x32xf32>
    %32 = vector.extract_strided_slice %28 {offsets = [0, 64], sizes = [8, 32], strides = [1, 1]} : vector<8x128xf32> to vector<8x32xf32>
    %33 = arith.addf %31, %32 : vector<8x32xf32>
    %34 = vector.extract_strided_slice %28 {offsets = [0, 96], sizes = [8, 32], strides = [1, 1]} : vector<8x128xf32> to vector<8x32xf32>
    %35 = arith.addf %33, %34 : vector<8x32xf32>
    %36 = vector.broadcast %9 : f32 to vector<8x32xf32>
    %37 = arith.mulf %36, %6 : vector<8x32xf32>
    %38 = arith.addf %35, %37 : vector<8x32xf32>
    %c1_i32_19 = arith.constant 1 : i32
    %39 = tpu.dynamic_rotate %8 by %c1_i32_19 dim 0 : vector<8x32xf32>, i32 -> vector<8x32xf32>
    %cst_20 = arith.constant 0.000000e+00 : f32
    %40 = vector.broadcast %cst_20 : f32 to vector<8x32xf32>
    %41 = arith.select %2, %39, %40 : vector<8x32xi1>, vector<8x32xf32>
    %c7_i32_21 = arith.constant 7 : i32
    %42 = tpu.dynamic_rotate %8 by %c7_i32_21 dim 0 : vector<8x32xf32>, i32 -> vector<8x32xf32>
    %cst_22 = arith.constant 0.000000e+00 : f32
    %43 = vector.broadcast %cst_22 : f32 to vector<8x32xf32>
    %44 = arith.select %4, %42, %43 : vector<8x32xi1>, vector<8x32xf32>
    %45 = tpu.concatenate %41, %8, %44 in 1 : vector<8x32xf32>, vector<8x32xf32>, vector<8x32xf32> -> vector<8x96xf32>
    %c0_23 = arith.constant 0 : index
    %c1_24 = arith.constant 1 : index
    %c0_25 = arith.constant 0 : index
    %c0_26 = arith.constant 0 : index
    %46 = vector.load %arg6[%c0_23, %c1_24, %c0_25, %c0_26] : memref<2x2x96x128xf32, #tpu.memory_space<vmem>>, vector<1x1x96x128xf32>
    %47 = vector.shape_cast %46 : vector<1x1x96x128xf32> to vector<96x128xf32>
    %cst_27 = arith.constant dense<0.000000e+00> : vector<8x128xf32>
    %48 = tpu.matmul %45, %47, %cst_27 {dimension_numbers = #tpu.dot_dimension_numbers<[1], [0], [0], [1], [0, 0, 1, 1], [], []>} : vector<8x96xf32>, vector<96x128xf32>, vector<8x128xf32> -> vector<8x128xf32>
    %c0_28 = arith.constant 0 : index
    %c1_29 = arith.constant 1 : index
    %c0_30 = arith.constant 0 : index
    %c0_31 = arith.constant 0 : index
    %49 = vector.load %arg7[%c0_28, %c1_29, %c0_30, %c0_31] : memref<2x2x1x128xf32, #tpu.memory_space<vmem>>, vector<1x1x1x128xf32>
    %50 = vector.shape_cast %49 : vector<1x1x1x128xf32> to vector<1x128xf32>
    %51 = vector.broadcast %50 : vector<1x128xf32> to vector<8x128xf32>
    %52 = arith.addf %48, %51 : vector<8x128xf32>
    %cst_32 = arith.constant 0.000000e+00 : f32
    %53 = vector.broadcast %cst_32 : f32 to vector<8x128xf32>
    %54 = arith.maximumf %52, %53 : vector<8x128xf32>
    %55 = vector.broadcast %10 : vector<1x128xf32> to vector<8x128xf32>
    %56 = arith.mulf %54, %55 : vector<8x128xf32>
    %57 = vector.extract_strided_slice %56 {offsets = [0, 0], sizes = [8, 32], strides = [1, 1]} : vector<8x128xf32> to vector<8x32xf32>
    %58 = vector.extract_strided_slice %56 {offsets = [0, 32], sizes = [8, 32], strides = [1, 1]} : vector<8x128xf32> to vector<8x32xf32>
    %59 = arith.addf %57, %58 : vector<8x32xf32>
    %60 = vector.extract_strided_slice %56 {offsets = [0, 64], sizes = [8, 32], strides = [1, 1]} : vector<8x128xf32> to vector<8x32xf32>
    %61 = arith.addf %59, %60 : vector<8x32xf32>
    %62 = vector.extract_strided_slice %56 {offsets = [0, 96], sizes = [8, 32], strides = [1, 1]} : vector<8x128xf32> to vector<8x32xf32>
    %63 = arith.addf %61, %62 : vector<8x32xf32>
    %64 = vector.broadcast %9 : f32 to vector<8x32xf32>
    %65 = arith.mulf %64, %8 : vector<8x32xf32>
    %66 = arith.addf %63, %65 : vector<8x32xf32>
    %c1_33 = arith.constant 1 : index
    %c4_34 = arith.constant 4 : index
    %67 = memref.load %arg0[%c1_33, %c4_34] : memref<2x5xf32, #tpu.memory_space<smem>>
    %c1_35 = arith.constant 1 : index
    %c0_36 = arith.constant 0 : index
    %68 = vector.load %arg5[%c1_35, %c0_36] : memref<2x128xf32, #tpu.memory_space<vmem>>, vector<1x128xf32>
    %c1_i32_37 = arith.constant 1 : i32
    %69 = tpu.dynamic_rotate %38 by %c1_i32_37 dim 0 : vector<8x32xf32>, i32 -> vector<8x32xf32>
    %cst_38 = arith.constant 0.000000e+00 : f32
    %70 = vector.broadcast %cst_38 : f32 to vector<8x32xf32>
    %71 = arith.select %2, %69, %70 : vector<8x32xi1>, vector<8x32xf32>
    %c7_i32_39 = arith.constant 7 : i32
    %72 = tpu.dynamic_rotate %38 by %c7_i32_39 dim 0 : vector<8x32xf32>, i32 -> vector<8x32xf32>
    %cst_40 = arith.constant 0.000000e+00 : f32
    %73 = vector.broadcast %cst_40 : f32 to vector<8x32xf32>
    %74 = arith.select %4, %72, %73 : vector<8x32xi1>, vector<8x32xf32>
    %75 = tpu.concatenate %71, %38, %74 in 1 : vector<8x32xf32>, vector<8x32xf32>, vector<8x32xf32> -> vector<8x96xf32>
    %c1_41 = arith.constant 1 : index
    %c0_42 = arith.constant 0 : index
    %c0_43 = arith.constant 0 : index
    %c0_44 = arith.constant 0 : index
    %76 = vector.load %arg6[%c1_41, %c0_42, %c0_43, %c0_44] : memref<2x2x96x128xf32, #tpu.memory_space<vmem>>, vector<1x1x96x128xf32>
    %77 = vector.shape_cast %76 : vector<1x1x96x128xf32> to vector<96x128xf32>
    %cst_45 = arith.constant dense<0.000000e+00> : vector<8x128xf32>
    %78 = tpu.matmul %75, %77, %cst_45 {dimension_numbers = #tpu.dot_dimension_numbers<[1], [0], [0], [1], [0, 0, 1, 1], [], []>} : vector<8x96xf32>, vector<96x128xf32>, vector<8x128xf32> -> vector<8x128xf32>
    %c1_46 = arith.constant 1 : index
    %c0_47 = arith.constant 0 : index
    %c0_48 = arith.constant 0 : index
    %c0_49 = arith.constant 0 : index
    %79 = vector.load %arg7[%c1_46, %c0_47, %c0_48, %c0_49] : memref<2x2x1x128xf32, #tpu.memory_space<vmem>>, vector<1x1x1x128xf32>
    %80 = vector.shape_cast %79 : vector<1x1x1x128xf32> to vector<1x128xf32>
    %81 = vector.broadcast %80 : vector<1x128xf32> to vector<8x128xf32>
    %82 = arith.addf %78, %81 : vector<8x128xf32>
    %cst_50 = arith.constant 0.000000e+00 : f32
    %83 = vector.broadcast %cst_50 : f32 to vector<8x128xf32>
    %84 = arith.maximumf %82, %83 : vector<8x128xf32>
    %85 = vector.broadcast %68 : vector<1x128xf32> to vector<8x128xf32>
    %86 = arith.mulf %84, %85 : vector<8x128xf32>
    %87 = vector.extract_strided_slice %86 {offsets = [0, 0], sizes = [8, 32], strides = [1, 1]} : vector<8x128xf32> to vector<8x32xf32>
    %88 = vector.extract_strided_slice %86 {offsets = [0, 32], sizes = [8, 32], strides = [1, 1]} : vector<8x128xf32> to vector<8x32xf32>
    %89 = arith.addf %87, %88 : vector<8x32xf32>
    %90 = vector.extract_strided_slice %86 {offsets = [0, 64], sizes = [8, 32], strides = [1, 1]} : vector<8x128xf32> to vector<8x32xf32>
    %91 = arith.addf %89, %90 : vector<8x32xf32>
    %92 = vector.extract_strided_slice %86 {offsets = [0, 96], sizes = [8, 32], strides = [1, 1]} : vector<8x128xf32> to vector<8x32xf32>
    %93 = arith.addf %91, %92 : vector<8x32xf32>
    %94 = vector.broadcast %67 : f32 to vector<8x32xf32>
    %95 = arith.mulf %94, %38 : vector<8x32xf32>
    %96 = arith.addf %93, %95 : vector<8x32xf32>
    %c1_i32_51 = arith.constant 1 : i32
    %97 = tpu.dynamic_rotate %66 by %c1_i32_51 dim 0 : vector<8x32xf32>, i32 -> vector<8x32xf32>
    %cst_52 = arith.constant 0.000000e+00 : f32
    %98 = vector.broadcast %cst_52 : f32 to vector<8x32xf32>
    %99 = arith.select %2, %97, %98 : vector<8x32xi1>, vector<8x32xf32>
    %c7_i32_53 = arith.constant 7 : i32
    %100 = tpu.dynamic_rotate %66 by %c7_i32_53 dim 0 : vector<8x32xf32>, i32 -> vector<8x32xf32>
    %cst_54 = arith.constant 0.000000e+00 : f32
    %101 = vector.broadcast %cst_54 : f32 to vector<8x32xf32>
    %102 = arith.select %4, %100, %101 : vector<8x32xi1>, vector<8x32xf32>
    %103 = tpu.concatenate %99, %66, %102 in 1 : vector<8x32xf32>, vector<8x32xf32>, vector<8x32xf32> -> vector<8x96xf32>
    %c1_55 = arith.constant 1 : index
    %c1_56 = arith.constant 1 : index
    %c0_57 = arith.constant 0 : index
    %c0_58 = arith.constant 0 : index
    %104 = vector.load %arg6[%c1_55, %c1_56, %c0_57, %c0_58] : memref<2x2x96x128xf32, #tpu.memory_space<vmem>>, vector<1x1x96x128xf32>
    %105 = vector.shape_cast %104 : vector<1x1x96x128xf32> to vector<96x128xf32>
    %cst_59 = arith.constant dense<0.000000e+00> : vector<8x128xf32>
    %106 = tpu.matmul %103, %105, %cst_59 {dimension_numbers = #tpu.dot_dimension_numbers<[1], [0], [0], [1], [0, 0, 1, 1], [], []>} : vector<8x96xf32>, vector<96x128xf32>, vector<8x128xf32> -> vector<8x128xf32>
    %c1_60 = arith.constant 1 : index
    %c1_61 = arith.constant 1 : index
    %c0_62 = arith.constant 0 : index
    %c0_63 = arith.constant 0 : index
    %107 = vector.load %arg7[%c1_60, %c1_61, %c0_62, %c0_63] : memref<2x2x1x128xf32, #tpu.memory_space<vmem>>, vector<1x1x1x128xf32>
    %108 = vector.shape_cast %107 : vector<1x1x1x128xf32> to vector<1x128xf32>
    %109 = vector.broadcast %108 : vector<1x128xf32> to vector<8x128xf32>
    %110 = arith.addf %106, %109 : vector<8x128xf32>
    %cst_64 = arith.constant 0.000000e+00 : f32
    %111 = vector.broadcast %cst_64 : f32 to vector<8x128xf32>
    %112 = arith.maximumf %110, %111 : vector<8x128xf32>
    %113 = vector.broadcast %68 : vector<1x128xf32> to vector<8x128xf32>
    %114 = arith.mulf %112, %113 : vector<8x128xf32>
    %115 = vector.extract_strided_slice %114 {offsets = [0, 0], sizes = [8, 32], strides = [1, 1]} : vector<8x128xf32> to vector<8x32xf32>
    %116 = vector.extract_strided_slice %114 {offsets = [0, 32], sizes = [8, 32], strides = [1, 1]} : vector<8x128xf32> to vector<8x32xf32>
    %117 = arith.addf %115, %116 : vector<8x32xf32>
    %118 = vector.extract_strided_slice %114 {offsets = [0, 64], sizes = [8, 32], strides = [1, 1]} : vector<8x128xf32> to vector<8x32xf32>
    %119 = arith.addf %117, %118 : vector<8x32xf32>
    %120 = vector.extract_strided_slice %114 {offsets = [0, 96], sizes = [8, 32], strides = [1, 1]} : vector<8x128xf32> to vector<8x32xf32>
    %121 = arith.addf %119, %120 : vector<8x32xf32>
    %122 = vector.broadcast %67 : f32 to vector<8x32xf32>
    %123 = arith.mulf %122, %66 : vector<8x32xf32>
    %124 = arith.addf %121, %123 : vector<8x32xf32>
    %c0_65 = arith.constant 0 : index
    %c0_66 = arith.constant 0 : index
    %125 = vector.load %arg4[%c0_65, %c0_66] : memref<1x16xf32, #tpu.memory_space<vmem>>, vector<1x16xf32>
    %c0_67 = arith.constant 0 : index
    %c0_68 = arith.constant 0 : index
    %126 = vector.load %arg8[%c0_67, %c0_68] : memref<16x32xf32, #tpu.memory_space<vmem>>, vector<16x32xf32>
    %cst_69 = arith.constant dense<0.000000e+00> : vector<1x32xf32>
    %127 = tpu.matmul %125, %126, %cst_69 {dimension_numbers = #tpu.dot_dimension_numbers<[1], [0], [0], [1], [0, 0, 1, 1], [], []>} : vector<1x16xf32>, vector<16x32xf32>, vector<1x32xf32> -> vector<1x32xf32>
    %c0_70 = arith.constant 0 : index
    %c0_71 = arith.constant 0 : index
    %128 = vector.load %arg9[%c0_70, %c0_71] : memref<1x32xf32, #tpu.memory_space<vmem>>, vector<1x32xf32>
    %129 = arith.addf %127, %128 : vector<1x32xf32>
    %c0_72 = arith.constant 0 : index
    %c0_73 = arith.constant 0 : index
    %c0_74 = arith.constant 0 : index
    %130 = vector.load %arg10[%c0_72, %c0_73, %c0_74] : memref<2x32x96xf32, #tpu.memory_space<vmem>>, vector<1x32x96xf32>
    %131 = vector.shape_cast %130 : vector<1x32x96xf32> to vector<32x96xf32>
    %cst_75 = arith.constant dense<0.000000e+00> : vector<1x96xf32>
    %132 = tpu.matmul %129, %131, %cst_75 {dimension_numbers = #tpu.dot_dimension_numbers<[1], [0], [0], [1], [0, 0, 1, 1], [], []>} : vector<1x32xf32>, vector<32x96xf32>, vector<1x96xf32> -> vector<1x96xf32>
    %c0_76 = arith.constant 0 : index
    %c0_77 = arith.constant 0 : index
    %c0_78 = arith.constant 0 : index
    %133 = vector.load %arg11[%c0_76, %c0_77, %c0_78] : memref<2x1x96xf32, #tpu.memory_space<vmem>>, vector<1x1x96xf32>
    %134 = vector.shape_cast %133 : vector<1x1x96xf32> to vector<1x96xf32>
    %135 = arith.addf %132, %134 : vector<1x96xf32>
    %cst_79 = arith.constant 0.000000e+00 : f32
    %136 = vector.broadcast %cst_79 : f32 to vector<1x96xf32>
    %137 = arith.maximumf %135, %136 : vector<1x96xf32>
    %138 = vector.extract_strided_slice %137 {offsets = [0, 0], sizes = [1, 32], strides = [1, 1]} : vector<1x96xf32> to vector<1x32xf32>
    %139 = vector.extract_strided_slice %137 {offsets = [0, 32], sizes = [1, 32], strides = [1, 1]} : vector<1x96xf32> to vector<1x32xf32>
    %140 = vector.extract_strided_slice %137 {offsets = [0, 64], sizes = [1, 32], strides = [1, 1]} : vector<1x96xf32> to vector<1x32xf32>
    %141 = arith.mulf %140, %129 : vector<1x32xf32>
    %c0_80 = arith.constant 0 : index
    %c0_81 = arith.constant 0 : index
    %c0_82 = arith.constant 0 : index
    %142 = vector.load %arg12[%c0_80, %c0_81, %c0_82] : memref<2x32x32xf32, #tpu.memory_space<vmem>>, vector<1x32x32xf32>
    %143 = vector.shape_cast %142 : vector<1x32x32xf32> to vector<32x32xf32>
    %cst_83 = arith.constant dense<0.000000e+00> : vector<1x32xf32>
    %144 = tpu.matmul %141, %143, %cst_83 {dimension_numbers = #tpu.dot_dimension_numbers<[1], [0], [0], [1], [0, 0, 1, 1], [], []>} : vector<1x32xf32>, vector<32x32xf32>, vector<1x32xf32> -> vector<1x32xf32>
    %c0_84 = arith.constant 0 : index
    %c0_85 = arith.constant 0 : index
    %c0_86 = arith.constant 0 : index
    %145 = vector.load %arg13[%c0_84, %c0_85, %c0_86] : memref<2x1x32xf32, #tpu.memory_space<vmem>>, vector<1x1x32xf32>
    %146 = vector.shape_cast %145 : vector<1x1x32xf32> to vector<1x32xf32>
    %147 = arith.addf %144, %146 : vector<1x32xf32>
    %cst_87 = arith.constant 0.000000e+00 : f32
    %148 = vector.broadcast %cst_87 : f32 to vector<1x32xf32>
    %149 = arith.maximumf %147, %148 : vector<1x32xf32>
    %c0_88 = arith.constant 0 : index
    %c0_89 = arith.constant 0 : index
    %150 = memref.load %arg2[%c0_88, %c0_89] : memref<2x3xf32, #tpu.memory_space<smem>>
    %151 = vector.broadcast %150 : f32 to vector<1x32xf32>
    %152 = arith.mulf %151, %138 : vector<1x32xf32>
    %c0_90 = arith.constant 0 : index
    %c1_91 = arith.constant 1 : index
    %153 = memref.load %arg2[%c0_90, %c1_91] : memref<2x3xf32, #tpu.memory_space<smem>>
    %154 = vector.broadcast %153 : f32 to vector<1x32xf32>
    %155 = arith.mulf %154, %139 : vector<1x32xf32>
    %156 = arith.addf %152, %155 : vector<1x32xf32>
    %c0_92 = arith.constant 0 : index
    %c2 = arith.constant 2 : index
    %157 = memref.load %arg2[%c0_92, %c2] : memref<2x3xf32, #tpu.memory_space<smem>>
    %158 = vector.broadcast %157 : f32 to vector<1x32xf32>
    %159 = arith.mulf %158, %149 : vector<1x32xf32>
    %160 = arith.addf %156, %159 : vector<1x32xf32>
    %c1_93 = arith.constant 1 : index
    %c0_94 = arith.constant 0 : index
    %c0_95 = arith.constant 0 : index
    %161 = vector.load %arg10[%c1_93, %c0_94, %c0_95] : memref<2x32x96xf32, #tpu.memory_space<vmem>>, vector<1x32x96xf32>
    %162 = vector.shape_cast %161 : vector<1x32x96xf32> to vector<32x96xf32>
    %cst_96 = arith.constant dense<0.000000e+00> : vector<1x96xf32>
    %163 = tpu.matmul %160, %162, %cst_96 {dimension_numbers = #tpu.dot_dimension_numbers<[1], [0], [0], [1], [0, 0, 1, 1], [], []>} : vector<1x32xf32>, vector<32x96xf32>, vector<1x96xf32> -> vector<1x96xf32>
    %c1_97 = arith.constant 1 : index
    %c0_98 = arith.constant 0 : index
    %c0_99 = arith.constant 0 : index
    %164 = vector.load %arg11[%c1_97, %c0_98, %c0_99] : memref<2x1x96xf32, #tpu.memory_space<vmem>>, vector<1x1x96xf32>
    %165 = vector.shape_cast %164 : vector<1x1x96xf32> to vector<1x96xf32>
    %166 = arith.addf %163, %165 : vector<1x96xf32>
    %cst_100 = arith.constant 0.000000e+00 : f32
    %167 = vector.broadcast %cst_100 : f32 to vector<1x96xf32>
    %168 = arith.maximumf %166, %167 : vector<1x96xf32>
    %169 = vector.extract_strided_slice %168 {offsets = [0, 0], sizes = [1, 32], strides = [1, 1]} : vector<1x96xf32> to vector<1x32xf32>
    %170 = vector.extract_strided_slice %168 {offsets = [0, 32], sizes = [1, 32], strides = [1, 1]} : vector<1x96xf32> to vector<1x32xf32>
    %171 = vector.extract_strided_slice %168 {offsets = [0, 64], sizes = [1, 32], strides = [1, 1]} : vector<1x96xf32> to vector<1x32xf32>
    %172 = arith.mulf %171, %160 : vector<1x32xf32>
    %c1_101 = arith.constant 1 : index
    %c0_102 = arith.constant 0 : index
    %c0_103 = arith.constant 0 : index
    %173 = vector.load %arg12[%c1_101, %c0_102, %c0_103] : memref<2x32x32xf32, #tpu.memory_space<vmem>>, vector<1x32x32xf32>
    %174 = vector.shape_cast %173 : vector<1x32x32xf32> to vector<32x32xf32>
    %cst_104 = arith.constant dense<0.000000e+00> : vector<1x32xf32>
    %175 = tpu.matmul %172, %174, %cst_104 {dimension_numbers = #tpu.dot_dimension_numbers<[1], [0], [0], [1], [0, 0, 1, 1], [], []>} : vector<1x32xf32>, vector<32x32xf32>, vector<1x32xf32> -> vector<1x32xf32>
    %c1_105 = arith.constant 1 : index
    %c0_106 = arith.constant 0 : index
    %c0_107 = arith.constant 0 : index
    %176 = vector.load %arg13[%c1_105, %c0_106, %c0_107] : memref<2x1x32xf32, #tpu.memory_space<vmem>>, vector<1x1x32xf32>
    %177 = vector.shape_cast %176 : vector<1x1x32xf32> to vector<1x32xf32>
    %178 = arith.addf %175, %177 : vector<1x32xf32>
    %cst_108 = arith.constant 0.000000e+00 : f32
    %179 = vector.broadcast %cst_108 : f32 to vector<1x32xf32>
    %180 = arith.maximumf %178, %179 : vector<1x32xf32>
    %c1_109 = arith.constant 1 : index
    %c0_110 = arith.constant 0 : index
    %181 = memref.load %arg2[%c1_109, %c0_110] : memref<2x3xf32, #tpu.memory_space<smem>>
    %182 = vector.broadcast %181 : f32 to vector<1x32xf32>
    %183 = arith.mulf %182, %169 : vector<1x32xf32>
    %c1_111 = arith.constant 1 : index
    %c1_112 = arith.constant 1 : index
    %184 = memref.load %arg2[%c1_111, %c1_112] : memref<2x3xf32, #tpu.memory_space<smem>>
    %185 = vector.broadcast %184 : f32 to vector<1x32xf32>
    %186 = arith.mulf %185, %170 : vector<1x32xf32>
    %187 = arith.addf %183, %186 : vector<1x32xf32>
    %c1_113 = arith.constant 1 : index
    %c2_114 = arith.constant 2 : index
    %188 = memref.load %arg2[%c1_113, %c2_114] : memref<2x3xf32, #tpu.memory_space<smem>>
    %189 = vector.broadcast %188 : f32 to vector<1x32xf32>
    %190 = arith.mulf %189, %180 : vector<1x32xf32>
    %191 = arith.addf %187, %190 : vector<1x32xf32>
    %cst_115 = arith.constant dense<0.000000e+00> : vector<32xf32>
    %192 = vector.multi_reduction <add>, %96, %cst_115 [0] : vector<8x32xf32> to vector<32xf32>
    %193 = vector.shape_cast %192 : vector<32xf32> to vector<1x32xf32>
    %cst_116 = arith.constant dense<0xFF800000> : vector<32xf32>
    %194 = vector.multi_reduction <maximumf>, %96, %cst_116 [0] : vector<8x32xf32> to vector<32xf32>
    %195 = vector.shape_cast %194 : vector<32xf32> to vector<1x32xf32>
    %cst_117 = arith.constant dense<0.000000e+00> : vector<32xf32>
    %196 = vector.multi_reduction <add>, %124, %cst_117 [0] : vector<8x32xf32> to vector<32xf32>
    %197 = vector.shape_cast %196 : vector<32xf32> to vector<1x32xf32>
    %198 = arith.addf %193, %197 : vector<1x32xf32>
    %cst_118 = arith.constant dense<0xFF800000> : vector<32xf32>
    %199 = vector.multi_reduction <maximumf>, %124, %cst_118 [0] : vector<8x32xf32> to vector<32xf32>
    %200 = vector.shape_cast %199 : vector<32xf32> to vector<1x32xf32>
    %201 = arith.maximumf %195, %200 : vector<1x32xf32>
    %c0_119 = arith.constant 0 : index
    %202 = memref.load %arg1[%c0_119] : memref<3xf32, #tpu.memory_space<smem>>
    %c1_120 = arith.constant 1 : index
    %203 = memref.load %arg1[%c1_120] : memref<3xf32, #tpu.memory_space<smem>>
    %cst_121 = arith.constant 6.250000e-02 : f32
    %204 = arith.mulf %203, %cst_121 : f32
    %205 = arith.addf %202, %204 : f32
    %206 = vector.broadcast %205 : f32 to vector<1x32xf32>
    %207 = arith.mulf %206, %198 : vector<1x32xf32>
    %c2_122 = arith.constant 2 : index
    %208 = memref.load %arg1[%c2_122] : memref<3xf32, #tpu.memory_space<smem>>
    %209 = vector.broadcast %208 : f32 to vector<1x32xf32>
    %210 = arith.mulf %209, %201 : vector<1x32xf32>
    %211 = arith.addf %207, %210 : vector<1x32xf32>
    %212 = arith.addf %211, %191 : vector<1x32xf32>
    %c0_123 = arith.constant 0 : index
    %c0_124 = arith.constant 0 : index
    %213 = vector.load %arg14[%c0_123, %c0_124] : memref<32x4xf32, #tpu.memory_space<vmem>>, vector<32x4xf32>
    %cst_125 = arith.constant dense<0.000000e+00> : vector<1x4xf32>
    %214 = tpu.matmul %212, %213, %cst_125 {dimension_numbers = #tpu.dot_dimension_numbers<[1], [0], [0], [1], [0, 0, 1, 1], [], []>} : vector<1x32xf32>, vector<32x4xf32>, vector<1x4xf32> -> vector<1x4xf32>
    %c0_126 = arith.constant 0 : index
    %c0_127 = arith.constant 0 : index
    %215 = vector.load %arg15[%c0_126, %c0_127] : memref<1x4xf32, #tpu.memory_space<vmem>>, vector<1x4xf32>
    %216 = arith.addf %214, %215 : vector<1x4xf32>
    %c0_128 = arith.constant 0 : index
    %c0_129 = arith.constant 0 : index
    %217 = vector.load %arg16[%c0_128, %c0_129] : memref<1x4xf32, #tpu.memory_space<vmem>>, vector<1x4xf32>
    tpu.vector_store %arg16[%c0_128, %c0_129], %216 {strides = array<i32>} : memref<1x4xf32, #tpu.memory_space<vmem>>, vector<1x4xf32>,
    return
  }
}

</mosaic_0001>

<llo_original>
// kernel: search_network_forward.1
$region0: #{search_network_forward.1}
  #allocation0 [shape = 'u32[]', space=smem, size = 0x4, offset = 0x4, fixed_abs, tag = 'smem constant byte address 0x4 - core index']
  #allocation1 [shape = 'u32[144,128]{1,0:T(1,128)}', space=vmem, size = 0x12000, scoped, tag = 'internal scratch']
  %s0 = inlined_call_operand.vmem [shape: f32[2,5], index: 0, kind: input, shape index: {}]
  %s1 = inlined_call_operand.vmem [shape: f32[3], index: 1, kind: input, shape index: {}]
  %s2 = inlined_call_operand.vmem [shape: f32[2,3], index: 2, kind: input, shape index: {}]
  %s3 = inlined_call_operand.vmem [shape: f32[2,8,32], index: 3, kind: input, shape index: {}]
  %s4 = inlined_call_operand.vmem [shape: f32[1,16], index: 4, kind: input, shape index: {}]
  %s5 = inlined_call_operand.vmem [shape: f32[2,128], index: 5, kind: input, shape index: {}]
  %s6 = inlined_call_operand.hbm [shape: f32[2,2,96,128], index: 6, kind: input, shape index: {}]
  %s7 = inlined_call_operand.vmem [shape: f32[2,2,1,128], index: 7, kind: input, shape index: {}]
  %s8 = inlined_call_operand.vmem [shape: f32[16,32], index: 8, kind: input, shape index: {}]
  %s9 = inlined_call_operand.vmem [shape: f32[1,32], index: 9, kind: input, shape index: {}]
  %s10 = inlined_call_operand.vmem [shape: f32[2,32,96], index: 10, kind: input, shape index: {}]
  %s11 = inlined_call_operand.vmem [shape: f32[2,1,96], index: 11, kind: input, shape index: {}]
  %s12 = inlined_call_operand.hbm [shape: f32[2,32,32], index: 12, kind: input, shape index: {}]
  %s13 = inlined_call_operand.vmem [shape: f32[2,1,32], index: 13, kind: input, shape index: {}]
  %s14 = inlined_call_operand.vmem [shape: f32[32,4], index: 14, kind: input, shape index: {}]
  %s15 = inlined_call_operand.hbm [shape: f32[1,4], index: 15, kind: input, shape index: {}]
  %s16 = inlined_call_operand.hbm [shape: f32[1,4], index: 16, kind: output, shape index: {}]
  %s17 = sld [smem:[#allocation0]]
  $region98: #{search_network_forward.1} parent=0
    _
  %s19 = ssub.s32 1, %s17
  %s20 = scalar_select 0, %s19, %s17
  $region1: #{search_network_forward.1} parent=0
    #allocation2 [shape = 'u8[1024]{0}', space=smem, size = 0x400, scoped, tag = 'input window, operand 0, single buffered']
    #allocation3 [shape = 's32[1]{0}', space=sflag, size = 0x4, scoped, tag = 'scoped memory for search_network_forward.1']
    #allocation4 [shape = 's32[1]{0}', space=sflag, size = 0x4, scoped, tag = 'scoped memory for search_network_forward.1']
    #allocation5 [shape = 's32[1]{0}', space=sflag, size = 0x4, scoped, tag = 'scoped memory for search_network_forward.1']
    #allocation6 [shape = 'u8[512]{0}', space=smem, size = 0x200, scoped, tag = 'input window, operand 1, single buffered']
    #allocation7 [shape = 's32[1]{0}', space=sflag, size = 0x4, scoped, tag = 'scoped memory for search_network_forward.1']
    #allocation8 [shape = 'u8[1024]{0}', space=smem, size = 0x400, scoped, tag = 'input window, operand 2, single buffered']
    #allocation9 [shape = 'u8[196608]{0}', space=vmem, size = 0x30000, scoped, tag = 'input window, operand 6, single buffered']
    #allocation10 [shape = 'u8[32768]{0}', space=vmem, size = 0x8000, scoped, tag = 'input window, operand 12, single buffered']
    #allocation11 [shape = 's32[1]{0}', space=sflag, size = 0x4, scoped, tag = 'scoped memory for search_network_forward.1']
    #allocation12 [shape = 'u8[512]{0}', space=vmem, size = 0x400, scoped, tag = 'input window, operand 15, single buffered']
    #allocation13 [shape = 'u8[512]{0}', space=vmem, size = 0x400, scoped, tag = 'output window, operand 0, single buffered']
    %21 = vsyncpa [#allocation5], 0
    %22 = vsyncpa [#allocation7], 0
    %23 = vsyncpa [#allocation3], 0
    %24 = vsyncpa [#allocation11], 0
    %25 = vsyncpa [#allocation4], 0
    // Predicated region
    $region2: #{search_network_forward.1} parent=1 // pred_check
      _
    $region3: #{search_network_forward.1} parent=1 // pred_check_branch
      %27 = sbr.rel (0) target = $region5
    $region4: #{search_network_forward.1} parent=1 // pred_region
      %s29 = ssub.s32 32, 32
      %30 = vsyncadd [#allocation5], %s29
      %s32 = sshll.u32 %s0, 4
      %s33 = int_to_ptr.vmem [resolvable:$true] %s32
      %35 = dma.vmem_to_smem %s33, 32, [#allocation2], [#allocation5]
    $region5: #{search_network_forward.1} parent=1 // pred_fallthru
      _
    // Predicated region
    $region6: #{search_network_forward.1} parent=1 // pred_check
      _
    $region7: #{search_network_forward.1} parent=1 // pred_check_branch
      %37 = sbr.rel (0) target = $region9
    $region8: #{search_network_forward.1} parent=1 // pred_region
      %s39 = ssub.s32 16, 16
      %40 = vsyncadd [#allocation7], %s39
      %s42 = sshll.u32 %s1, 4
      %s43 = int_to_ptr.vmem [resolvable:$true] %s42
      %45 = dma.vmem_to_smem %s43, 16, [#allocation6], [#allocation7]
    $region9: #{search_network_forward.1} parent=1 // pred_fallthru
      _
    // Predicated region
    $region10: #{search_network_forward.1} parent=1 // pred_check
      _
    $region11: #{search_network_forward.1} parent=1 // pred_check_branch
      %47 = sbr.rel (0) target = $region13
    $region12: #{search_network_forward.1} parent=1 // pred_region
      %s49 = ssub.s32 32, 32
      %50 = vsyncadd [#allocation7], %s49
      %s52 = sshll.u32 %s2, 4
      %s53 = int_to_ptr.vmem [resolvable:$true] %s52
      %55 = dma.vmem_to_smem %s53, 32, [#allocation8], [#allocation7]
    $region13: #{search_network_forward.1} parent=1 // pred_fallthru
      _
    // Predicated region
    $region14: #{search_network_forward.1} parent=1 // pred_check
      _
    $region15: #{search_network_forward.1} parent=1 // pred_check_branch
      %57 = sbr.rel (0) target = $region17
    $region16: #{search_network_forward.1} parent=1 // pred_region
      _
    $region17: #{search_network_forward.1} parent=1 // pred_fallthru
      _
    // Predicated region
    $region18: #{search_network_forward.1} parent=1 // pred_check
      _
    $region19: #{search_network_forward.1} parent=1 // pred_check_branch
      %59 = sbr.rel (0) target = $region21
    $region20: #{search_network_forward.1} parent=1 // pred_region
      _
    $region21: #{search_network_forward.1} parent=1 // pred_fallthru
      _
    // Predicated region
    $region22: #{search_network_forward.1} parent=1 // pred_check
      _
    $region23: #{search_network_forward.1} parent=1 // pred_check_branch
      %61 = sbr.rel (0) target = $region25
    $region24: #{search_network_forward.1} parent=1 // pred_region
      _
    $region25: #{search_network_forward.1} parent=1 // pred_fallthru
      _
    // Predicated region
    $region26: #{search_network_forward.1} parent=1 // pred_check
      _
    $region27: #{search_network_forward.1} parent=1 // pred_check_branch
      %63 = sbr.rel (0) target = $region29
    $region28: #{search_network_forward.1} parent=1 // pred_region
      %s65 = ssub.s32 6144, 6144
      %66 = vsyncadd [#allocation3], %s65
      %s67 = sshll.u32 [#allocation9], 4
      %s68 = int_to_ptr.vmem [resolvable:$true] %s67
      %73 = dma.hbm_to_vmem [thread:$0]  %s6, 6144, %s68, [#allocation3], 128, 128, 8
    $region29: #{search_network_forward.1} parent=1 // pred_fallthru
      _
    // Predicated region
    $region30: #{search_network_forward.1} parent=1 // pred_check
      _
    $region31: #{search_network_forward.1} parent=1 // pred_check_branch
      %75 = sbr.rel (0) target = $region33
    $region32: #{search_network_forward.1} parent=1 // pred_region
      _
    $region33: #{search_network_forward.1} parent=1 // pred_fallthru
      _
    // Predicated region
    $region34: #{search_network_forward.1} parent=1 // pred_check
      _
    $region35: #{search_network_forward.1} parent=1 // pred_check_branch
      %77 = sbr.rel (0) target = $region37
    $region36: #{search_network_forward.1} parent=1 // pred_region
      _
    $region37: #{search_network_forward.1} parent=1 // pred_fallthru
      _
    // Predicated region
    $region38: #{search_network_forward.1} parent=1 // pred_check
      _
    $region39: #{search_network_forward.1} parent=1 // pred_check_branch
      %79 = sbr.rel (0) target = $region41
    $region40: #{search_network_forward.1} parent=1 // pred_region
      _
    $region41: #{search_network_forward.1} parent=1 // pred_fallthru
      _
    // Predicated region
    $region42: #{search_network_forward.1} parent=1 // pred_check
      _
    $region43: #{search_network_forward.1} parent=1 // pred_check_branch
      %81 = sbr.rel (0) target = $region45
    $region44: #{search_network_forward.1} parent=1 // pred_region
      _
    $region45: #{search_network_forward.1} parent=1 // pred_fallthru
      _
    // Predicated region
    $region46: #{search_network_forward.1} parent=1 // pred_check
      _
    $region47: #{search_network_forward.1} parent=1 // pred_check_branch
      %83 = sbr.rel (0) target = $region49
    $region48: #{search_network_forward.1} parent=1 // pred_region
      _
    $region49: #{search_network_forward.1} parent=1 // pred_fallthru
      _
    // Predicated region
    $region50: #{search_network_forward.1} parent=1 // pred_check
      _
    $region51: #{search_network_forward.1} parent=1 // pred_check_branch
      %85 = sbr.rel (0) target = $region53
    $region52: #{search_network_forward.1} parent=1 // pred_region
      %s87 = ssub.s32 1024, 1024
      %88 = vsyncadd [#allocation11], %s87
      %s89 = sshll.u32 [#allocation10], 4
      %s90 = int_to_ptr.vmem [resolvable:$true] %s89
      %95 = dma.hbm_to_vmem [thread:$0]  %s12, 1024, %s90, [#allocation11], 128, 128, 8
    $region53: #{search_network_forward.1} parent=1 // pred_fallthru
      _
    // Predicated region
    $region54: #{search_network_forward.1} parent=1 // pred_check
      _
    $region55: #{search_network_forward.1} parent=1 // pred_check_branch
      %97 = sbr.rel (0) target = $region57
    $region56: #{search_network_forward.1} parent=1 // pred_region
      _
    $region57: #{search_network_forward.1} parent=1 // pred_fallthru
      _
    // Predicated region
    $region58: #{search_network_forward.1} parent=1 // pred_check
      _
    $region59: #{search_network_forward.1} parent=1 // pred_check_branch
      %99 = sbr.rel (0) target = $region61
    $region60: #{search_network_forward.1} parent=1 // pred_region
      _
    $region61: #{search_network_forward.1} parent=1 // pred_fallthru
      _
    // Predicated region
    $region62: #{search_network_forward.1} parent=1 // pred_check
      _
    $region63: #{search_network_forward.1} parent=1 // pred_check_branch
      %101 = sbr.rel (0) target = $region65
    $region64: #{search_network_forward.1} parent=1 // pred_region
      %s103 = ssub.s32 16, 16
      %104 = vsyncadd [#allocation11], %s103
      %s106 = sshll.u32 [#allocation12], 4
      %s107 = int_to_ptr.vmem [resolvable:$true] %s106
      %109 = dma.hbm_to_vmem [thread:$0]  %s15, 16, %s107, [#allocation11]
    $region65: #{search_network_forward.1} parent=1 // pred_fallthru
      _
    // Predicated region
    $region66: #{search_network_forward.1} parent=1 // pred_check
      _
    $region67: #{search_network_forward.1} parent=1 // pred_check_branch
      %111 = sbr.rel (0) target = $region69
    $region68: #{search_network_forward.1} parent=1 // pred_region
      %112 = dma.done [#allocation5], 32
    $region69: #{search_network_forward.1} parent=1 // pred_fallthru
      _
    // Predicated region
    $region70: #{search_network_forward.1} parent=1 // pred_check
      _
    $region71: #{search_network_forward.1} parent=1 // pred_check_branch
      %114 = sbr.rel (0) target = $region73
    $region72: #{search_network_forward.1} parent=1 // pred_region
      %115 = dma.done [#allocation7], 16
    $region73: #{search_network_forward.1} parent=1 // pred_fallthru
      _
    // Predicated region
    $region74: #{search_network_forward.1} parent=1 // pred_check
      _
    $region75: #{search_network_forward.1} parent=1 // pred_check_branch
      %117 = sbr.rel (0) target = $region77
    $region76: #{search_network_forward.1} parent=1 // pred_region
      %118 = dma.done [#allocation7], 32
    $region77: #{search_network_forward.1} parent=1 // pred_fallthru
      _
    // Predicated region
    $region78: #{search_network_forward.1} parent=1 // pred_check
      _
    $region79: #{search_network_forward.1} parent=1 // pred_check_branch
      %120 = sbr.rel (0) target = $region81
    $region80: #{search_network_forward.1} parent=1 // pred_region
      %121 = dma.done [#allocation3], 6144
    $region81: #{search_network_forward.1} parent=1 // pred_fallthru
      _
    // Predicated region
    $region82: #{search_network_forward.1} parent=1 // pred_check
      _
    $region83: #{search_network_forward.1} parent=1 // pred_check_branch
      %123 = sbr.rel (0) target = $region85
    $region84: #{search_network_forward.1} parent=1 // pred_region
      %124 = dma.done [#allocation11], 1024
    $region85: #{search_network_forward.1} parent=1 // pred_fallthru
      _
    // Predicated region
    $region86: #{search_network_forward.1} parent=1 // pred_check
      _
    $region87: #{search_network_forward.1} parent=1 // pred_check_branch
      %126 = sbr.rel (0) target = $region89
    $region88: #{search_network_forward.1} parent=1 // pred_region
      %127 = dma.done [#allocation11], 16
    $region89: #{search_network_forward.1} parent=1 // pred_fallthru
      _
    %128 = sfence
    %v129 = vlaneseq
    %v130 = vshrl.u32 %v129, 7
    %vm131 = vcmp.ne.s32.totalorder %v130, 0
    %vm132 = vcmp.ne.s32.totalorder %v130, 7
    %v133 = vld [vmem:[%s3] sm:$0xff]
    %s134 = scalar_lea.vmem %s3, 8
    %v135 = vld [vmem:[%s134] sm:$0xff]
    %s136 = sld [smem:[#allocation2 + $0x4]]
    %v137 = vld [vmem:[%s5] sm:$0x1]
    %v138 = vrot.slane %v133, 7
    %v139 = vsel %vm131, %v138, 0.0
    %v140 = vrot.slane %v133, 1
    %v141 = vsel %vm132, %v140, 0.0
    %143 = vrot.lane.b32.xlu0 %v133, 32
    %v144 = vpop.permute.xlu0 %143
    %147 = vrot.lane.b32.xlu0 %v141, 64
    %v148 = vpop.permute.xlu0 %147
    %vm150 = vcmask 261120
    %v151 = vsel %vm150, %v139, %v144
    %vm152 = vcmask 523264
    %v153 = vsel %vm152, %v151, %v148
    %v154 = vld [vmem:[#allocation9] sm:$0xff]
    %v155 = vld [vmem:[#allocation9 + $0x8] sm:$0xff]
    %v156 = vld [vmem:[#allocation9 + $0x10] sm:$0xff]
    %v157 = vld [vmem:[#allocation9 + $0x18] sm:$0xff]
    %v158 = vld [vmem:[#allocation9 + $0x20] sm:$0xff]
    %v159 = vld [vmem:[#allocation9 + $0x28] sm:$0xff]
    %v160 = vld [vmem:[#allocation9 + $0x30] sm:$0xff]
    %v161 = vld [vmem:[#allocation9 + $0x38] sm:$0xff]
    %v162 = vld [vmem:[#allocation9 + $0x40] sm:$0xff]
    %v163 = vld [vmem:[#allocation9 + $0x48] sm:$0xff]
    %v164 = vld [vmem:[#allocation9 + $0x50] sm:$0xff]
    %v165 = vld [vmem:[#allocation9 + $0x58] sm:$0xff]
    %v166 = vld [vmem:[%s7] sm:$0x1]
    %v168 = vlaneseq
    %v169 = vshrl.u32 %v168, 7
    %v170 = vsub.s32 0, %v169
    %v171 = vrot.slane %v166, %v170
    %vm173 = vcmask 785408
    %v175 = vsel %vm173, %v153, 0
    %177 = vmatprep.subr.mxu0 0.0
    %178 = vmatpush1.msra.mxu0 0.0
    %179 = vmatprep.subr.mxu0 0.0
    %180 = vmatpush1.msra.mxu0 0.0
    %181 = vmatprep.subr.mxu0 0.0
    %182 = vmatpush1.msra.mxu0 0.0
    %183 = vmatprep.subr.mxu0 0.0
    %184 = vmatpush1.msra.mxu0 0.0
    %185 = vmatprep.subr.mxu0 0.0
    %186 = vmatpush1.msra.mxu0 %v165
    %187 = vmatprep.subr.mxu0 0.0
    %188 = vmatpush1.msra.mxu0 %v164
    %189 = vmatprep.subr.mxu0 0.0
    %190 = vmatpush1.msra.mxu0 %v163
    %191 = vmatprep.subr.mxu0 0.0
    %192 = vmatpush1.msra.mxu0 %v162
    %193 = vmatprep.subr.mxu0 0.0
    %194 = vmatpush1.msra.mxu0 %v161
    %195 = vmatprep.subr.mxu0 0.0
    %196 = vmatpush1.msra.mxu0 %v160
    %197 = vmatprep.subr.mxu0 0.0
    %198 = vmatpush1.msra.mxu0 %v159
    %199 = vmatprep.subr.mxu0 0.0
    %200 = vmatpush1.msra.mxu0 %v158
    %201 = vmatprep.subr.mxu0 0.0
    %202 = vmatpush1.msra.mxu0 %v157
    %203 = vmatprep.subr.mxu0 0.0
    %204 = vmatpush1.msra.mxu0 %v156
    %205 = vmatprep.subr.mxu0 0.0
    %206 = vmatpush1.msra.mxu0 %v155
    %207 = vmatprep.subr.mxu0 0.0
    %208 = vmatpush1.msra.mxu0 %v154
    %209 = vmatprep.subr.mxu0 0.0
    %210 = vmatpush2.msra.mxu0 0.0
    %211 = vmatprep.subr.mxu0 0.0
    %212 = vmatpush2.msra.mxu0 0.0
    %213 = vmatprep.subr.mxu0 0.0
    %214 = vmatpush2.msra.mxu0 0.0
    %215 = vmatprep.subr.mxu0 0.0
    %216 = vmatpush2.msra.mxu0 0.0
    %217 = vmatprep.subr.mxu0 0.0
    %218 = vmatpush2.msra.mxu0 0.0
    %219 = vmatprep.subr.mxu0 0.0
    %220 = vmatpush2.msra.mxu0 0.0
    %221 = vmatprep.subr.mxu0 0.0
    %222 = vmatpush2.msra.mxu0 0.0
    %223 = vmatprep.subr.mxu0 0.0
    %224 = vmatpush2.msra.mxu0 0.0
    %225 = vmatprep.subr.mxu0 0.0
    %226 = vmatpush2.msra.mxu0 0.0
    %227 = vmatprep.subr.mxu0 0.0
    %228 = vmatpush2.msra.mxu0 0.0
    %229 = vmatprep.subr.mxu0 0.0
    %230 = vmatpush2.msra.mxu0 0.0
    %231 = vmatprep.subr.mxu0 0.0
    %232 = vmatpush2.msra.mxu0 0.0
    %233 = vmatprep.subr.mxu0 0.0
    %234 = vmatpush2.msra.mxu0 0.0
    %235 = vmatprep.subr.mxu0 0.0
    %236 = vmatpush2.msra.mxu0 0.0
    %237 = vmatprep.subr.mxu0 0.0
    %238 = vmatpush2.msra.mxu0 0.0
    %239 = vmatprep.subr.mxu0 0.0
    %240 = vmatpush2.msra.mxu0 0.0
    %241 = vmatprep.mubr.f32.mxu0 0.0
    %242 = vmatmul.mubr.f32.gmra.mxu0 %v175
    %v243 = vpop.f32.mrf.mxu0
    %v244 = vadd.f32 %v171, %v243
    %v245 = vpop.f32.mrf.mxu0
    %246 = vdwg.mxu0
    %v247 = vmax.f32 %v244, 0.0
    %v248 = vlaneseq
    %v249 = vshrl.u32 %v248, 7
    %v250 = vsub.s32 0, %v249
    %v251 = vrot.slane %v137, %v250
    %v252 = vmul.f32 %v247, %v251
    %254 = vrot.lane.b32.xlu0 %v252, 96
    %v255 = vpop.permute.xlu0 %254
    %v257 = vadd.f32 %v252, %v255
    %258 = vrot.lane.b32.xlu0 %v252, 64
    %v259 = vpop.permute.xlu0 %258
    %v261 = vadd.f32 %v257, %v259
    %262 = vrot.lane.b32.xlu0 %v252, 32
    %v263 = vpop.permute.xlu0 %262
    %v265 = vadd.f32 %v261, %v263
    %v266 = vstv %s136
    %v267 = vmul.f32 %v266, %v133
    %v268 = vadd.f32 %v265, %v267
    %v269 = vrot.slane %v135, 7
    %v270 = vsel %vm131, %v269, 0.0
    %v271 = vrot.slane %v135, 1
    %v272 = vsel %vm132, %v271, 0.0
    %274 = vrot.lane.b32.xlu0 %v135, 32
    %v275 = vpop.permute.xlu0 %274
    %278 = vrot.lane.b32.xlu0 %v272, 64
    %v279 = vpop.permute.xlu0 %278
    %v281 = vsel %vm150, %v270, %v275
    %v282 = vsel %vm152, %v281, %v279
    %s283 = scalar_lea.vmem [#allocation9], 96
    %v284 = vld [vmem:[%s283] sm:$0xff]
    %v285 = vld [vmem:[%s283 + $0x8] sm:$0xff]
    %v286 = vld [vmem:[%s283 + $0x10] sm:$0xff]
    %v287 = vld [vmem:[%s283 + $0x18] sm:$0xff]
    %v288 = vld [vmem:[%s283 + $0x20] sm:$0xff]
    %v289 = vld [vmem:[%s283 + $0x28] sm:$0xff]
    %v290 = vld [vmem:[%s283 + $0x30] sm:$0xff]
    %v291 = vld [vmem:[%s283 + $0x38] sm:$0xff]
    %v292 = vld [vmem:[%s283 + $0x40] sm:$0xff]
    %v293 = vld [vmem:[%s283 + $0x48] sm:$0xff]
    %v294 = vld [vmem:[%s283 + $0x50] sm:$0xff]
    %v295 = vld [vmem:[%s283 + $0x58] sm:$0xff]
    %s296 = scalar_lea.vmem %s7, 1
    %v297 = vld [vmem:[%s296] sm:$0x1]
    %v299 = vlaneseq
    %v300 = vshrl.u32 %v299, 7
    %v301 = vsub.s32 0, %v300
    %v302 = vrot.slane %v297, %v301
    %v305 = vsel %vm173, %v282, 0
    %307 = vmatprep.subr.mxu0 0.0
    %308 = vmatpush1.msra.mxu0 0.0
    %309 = vmatprep.subr.mxu0 0.0
    %310 = vmatpush1.msra.mxu0 0.0
    %311 = vmatprep.subr.mxu0 0.0
    %312 = vmatpush1.msra.mxu0 0.0
    %313 = vmatprep.subr.mxu0 0.0
    %314 = vmatpush1.msra.mxu0 0.0
    %315 = vmatprep.subr.mxu0 0.0
    %316 = vmatpush1.msra.mxu0 %v295
    %317 = vmatprep.subr.mxu0 0.0
    %318 = vmatpush1.msra.mxu0 %v294
    %319 = vmatprep.subr.mxu0 0.0
    %320 = vmatpush1.msra.mxu0 %v293
    %321 = vmatprep.subr.mxu0 0.0
    %322 = vmatpush1.msra.mxu0 %v292
    %323 = vmatprep.subr.mxu0 0.0
    %324 = vmatpush1.msra.mxu0 %v291
    %325 = vmatprep.subr.mxu0 0.0
    %326 = vmatpush1.msra.mxu0 %v290
    %327 = vmatprep.subr.mxu0 0.0
    %328 = vmatpush1.msra.mxu0 %v289
    %329 = vmatprep.subr.mxu0 0.0
    %330 = vmatpush1.msra.mxu0 %v288
    %331 = vmatprep.subr.mxu0 0.0
    %332 = vmatpush1.msra.mxu0 %v287
    %333 = vmatprep.subr.mxu0 0.0
    %334 = vmatpush1.msra.mxu0 %v286
    %335 = vmatprep.subr.mxu0 0.0
    %336 = vmatpush1.msra.mxu0 %v285
    %337 = vmatprep.subr.mxu0 0.0
    %338 = vmatpush1.msra.mxu0 %v284
    %339 = vmatprep.subr.mxu0 0.0
    %340 = vmatpush2.msra.mxu0 0.0
    %341 = vmatprep.subr.mxu0 0.0
    %342 = vmatpush2.msra.mxu0 0.0
    %343 = vmatprep.subr.mxu0 0.0
    %344 = vmatpush2.msra.mxu0 0.0
    %345 = vmatprep.subr.mxu0 0.0
    %346 = vmatpush2.msra.mxu0 0.0
    %347 = vmatprep.subr.mxu0 0.0
    %348 = vmatpush2.msra.mxu0 0.0
    %349 = vmatprep.subr.mxu0 0.0
    %350 = vmatpush2.msra.mxu0 0.0
    %351 = vmatprep.subr.mxu0 0.0
    %352 = vmatpush2.msra.mxu0 0.0
    %353 = vmatprep.subr.mxu0 0.0
    %354 = vmatpush2.msra.mxu0 0.0
    %355 = vmatprep.subr.mxu0 0.0
    %356 = vmatpush2.msra.mxu0 0.0
    %357 = vmatprep.subr.mxu0 0.0
    %358 = vmatpush2.msra.mxu0 0.0
    %359 = vmatprep.subr.mxu0 0.0
    %360 = vmatpush2.msra.mxu0 0.0
    %361 = vmatprep.subr.mxu0 0.0
    %362 = vmatpush2.msra.mxu0 0.0
    %363 = vmatprep.subr.mxu0 0.0
    %364 = vmatpush2.msra.mxu0 0.0
    %365 = vmatprep.subr.mxu0 0.0
    %366 = vmatpush2.msra.mxu0 0.0
    %367 = vmatprep.subr.mxu0 0.0
    %368 = vmatpush2.msra.mxu0 0.0
    %369 = vmatprep.subr.mxu0 0.0
    %370 = vmatpush2.msra.mxu0 0.0
    %371 = vmatprep.mubr.f32.mxu0 0.0
    %372 = vmatmul.mubr.f32.gmra.mxu0 %v305
    %v373 = vpop.f32.mrf.mxu0
    %v374 = vadd.f32 %v302, %v373
    %v375 = vpop.f32.mrf.mxu0
    %376 = vdwg.mxu0
    %v377 = vmax.f32 %v374, 0.0
    %v378 = vmul.f32 %v377, %v251
    %380 = vrot.lane.b32.xlu0 %v378, 96
    %v381 = vpop.permute.xlu0 %380
    %v383 = vadd.f32 %v378, %v381
    %384 = vrot.lane.b32.xlu0 %v378, 64
    %v385 = vpop.permute.xlu0 %384
    %v387 = vadd.f32 %v383, %v385
    %388 = vrot.lane.b32.xlu0 %v378, 32
    %v389 = vpop.permute.xlu0 %388
    %v391 = vadd.f32 %v387, %v389
    %v392 = vmul.f32 %v266, %v135
    %v393 = vadd.f32 %v391, %v392
    %s394 = sld [smem:[#allocation2 + $0x84]]
    %v395 = vld [vmem:[%s5 + $0x1] sm:$0x1]
    %v396 = vrot.slane %v268, 7
    %v397 = vsel %vm131, %v396, 0.0
    %v398 = vrot.slane %v268, 1
    %v399 = vsel %vm132, %v398, 0.0
    %401 = vrot.lane.b32.xlu0 %v268, 32
    %v402 = vpop.permute.xlu0 %401
    %405 = vrot.lane.b32.xlu0 %v399, 64
    %v406 = vpop.permute.xlu0 %405
    %v408 = vsel %vm150, %v397, %v402
    %v409 = vsel %vm152, %v408, %v406
    %s410 = scalar_lea.vmem [#allocation9], 192
    %v411 = vld [vmem:[%s410] sm:$0xff]
    %v412 = vld [vmem:[%s410 + $0x8] sm:$0xff]
    %v413 = vld [vmem:[%s410 + $0x10] sm:$0xff]
    %v414 = vld [vmem:[%s410 + $0x18] sm:$0xff]
    %v415 = vld [vmem:[%s410 + $0x20] sm:$0xff]
    %v416 = vld [vmem:[%s410 + $0x28] sm:$0xff]
    %v417 = vld [vmem:[%s410 + $0x30] sm:$0xff]
    %v418 = vld [vmem:[%s410 + $0x38] sm:$0xff]
    %v419 = vld [vmem:[%s410 + $0x40] sm:$0xff]
    %v420 = vld [vmem:[%s410 + $0x48] sm:$0xff]
    %v421 = vld [vmem:[%s410 + $0x50] sm:$0xff]
    %v422 = vld [vmem:[%s410 + $0x58] sm:$0xff]
    %s423 = scalar_lea.vmem %s7, 2
    %v424 = vld [vmem:[%s423] sm:$0x1]
    %v426 = vlaneseq
    %v427 = vshrl.u32 %v426, 7
    %v428 = vsub.s32 0, %v427
    %v429 = vrot.slane %v424, %v428
    %v432 = vsel %vm173, %v409, 0
    %434 = vmatprep.subr.mxu0 0.0
    %435 = vmatpush1.msra.mxu0 0.0
    %436 = vmatprep.subr.mxu0 0.0
    %437 = vmatpush1.msra.mxu0 0.0
    %438 = vmatprep.subr.mxu0 0.0
    %439 = vmatpush1.msra.mxu0 0.0
    %440 = vmatprep.subr.mxu0 0.0
    %441 = vmatpush1.msra.mxu0 0.0
    %442 = vmatprep.subr.mxu0 0.0
    %443 = vmatpush1.msra.mxu0 %v422
    %444 = vmatprep.subr.mxu0 0.0
    %445 = vmatpush1.msra.mxu0 %v421
    %446 = vmatprep.subr.mxu0 0.0
    %447 = vmatpush1.msra.mxu0 %v420
    %448 = vmatprep.subr.mxu0 0.0
    %449 = vmatpush1.msra.mxu0 %v419
    %450 = vmatprep.subr.mxu0 0.0
    %451 = vmatpush1.msra.mxu0 %v418
    %452 = vmatprep.subr.mxu0 0.0
    %453 = vmatpush1.msra.mxu0 %v417
    %454 = vmatprep.subr.mxu0 0.0
    %455 = vmatpush1.msra.mxu0 %v416
    %456 = vmatprep.subr.mxu0 0.0
    %457 = vmatpush1.msra.mxu0 %v415
    %458 = vmatprep.subr.mxu0 0.0
    %459 = vmatpush1.msra.mxu0 %v414
    %460 = vmatprep.subr.mxu0 0.0
    %461 = vmatpush1.msra.mxu0 %v413
    %462 = vmatprep.subr.mxu0 0.0
    %463 = vmatpush1.msra.mxu0 %v412
    %464 = vmatprep.subr.mxu0 0.0
    %465 = vmatpush1.msra.mxu0 %v411
    %466 = vmatprep.subr.mxu0 0.0
    %467 = vmatpush2.msra.mxu0 0.0
    %468 = vmatprep.subr.mxu0 0.0
    %469 = vmatpush2.msra.mxu0 0.0
    %470 = vmatprep.subr.mxu0 0.0
    %471 = vmatpush2.msra.mxu0 0.0
    %472 = vmatprep.subr.mxu0 0.0
    %473 = vmatpush2.msra.mxu0 0.0
    %474 = vmatprep.subr.mxu0 0.0
    %475 = vmatpush2.msra.mxu0 0.0
    %476 = vmatprep.subr.mxu0 0.0
    %477 = vmatpush2.msra.mxu0 0.0
    %478 = vmatprep.subr.mxu0 0.0
    %479 = vmatpush2.msra.mxu0 0.0
    %480 = vmatprep.subr.mxu0 0.0
    %481 = vmatpush2.msra.mxu0 0.0
    %482 = vmatprep.subr.mxu0 0.0
    %483 = vmatpush2.msra.mxu0 0.0
    %484 = vmatprep.subr.mxu0 0.0
    %485 = vmatpush2.msra.mxu0 0.0
    %486 = vmatprep.subr.mxu0 0.0
    %487 = vmatpush2.msra.mxu0 0.0
    %488 = vmatprep.subr.mxu0 0.0
    %489 = vmatpush2.msra.mxu0 0.0
    %490 = vmatprep.subr.mxu0 0.0
    %491 = vmatpush2.msra.mxu0 0.0
    %492 = vmatprep.subr.mxu0 0.0
    %493 = vmatpush2.msra.mxu0 0.0
    %494 = vmatprep.subr.mxu0 0.0
    %495 = vmatpush2.msra.mxu0 0.0
    %496 = vmatprep.subr.mxu0 0.0
    %497 = vmatpush2.msra.mxu0 0.0
    %498 = vmatprep.mubr.f32.mxu0 0.0
    %499 = vmatmul.mubr.f32.gmra.mxu0 %v432
    %v500 = vpop.f32.mrf.mxu0
    %v501 = vadd.f32 %v429, %v500
    %v502 = vpop.f32.mrf.mxu0
    %503 = vdwg.mxu0
    %v504 = vmax.f32 %v501, 0.0
    %v505 = vlaneseq
    %v506 = vshrl.u32 %v505, 7
    %v507 = vsub.s32 0, %v506
    %v508 = vrot.slane %v395, %v507
    %v509 = vmul.f32 %v504, %v508
    %511 = vrot.lane.b32.xlu0 %v509, 96
    %v512 = vpop.permute.xlu0 %511
    %v514 = vadd.f32 %v509, %v512
    %515 = vrot.lane.b32.xlu0 %v509, 64
    %v516 = vpop.permute.xlu0 %515
    %v518 = vadd.f32 %v514, %v516
    %519 = vrot.lane.b32.xlu0 %v509, 32
    %v520 = vpop.permute.xlu0 %519
    %v522 = vadd.f32 %v518, %v520
    %v523 = vstv %s394
    %v524 = vmul.f32 %v523, %v268
    %v525 = vadd.f32 %v522, %v524
    %v526 = vrot.slane %v393, 7
    %v527 = vsel %vm131, %v526, 0.0
    %v528 = vrot.slane %v393, 1
    %v529 = vsel %vm132, %v528, 0.0
    %531 = vrot.lane.b32.xlu0 %v393, 32
    %v532 = vpop.permute.xlu0 %531
    %535 = vrot.lane.b32.xlu0 %v529, 64
    %v536 = vpop.permute.xlu0 %535
    %v538 = vsel %vm150, %v527, %v532
    %v539 = vsel %vm152, %v538, %v536
    %s540 = scalar_lea.vmem [#allocation9], 288
    %v541 = vld [vmem:[%s540] sm:$0xff]
    %v542 = vld [vmem:[%s540 + $0x8] sm:$0xff]
    %v543 = vld [vmem:[%s540 + $0x10] sm:$0xff]
    %v544 = vld [vmem:[%s540 + $0x18] sm:$0xff]
    %v545 = vld [vmem:[%s540 + $0x20] sm:$0xff]
    %v546 = vld [vmem:[%s540 + $0x28] sm:$0xff]
    %v547 = vld [vmem:[%s540 + $0x30] sm:$0xff]
    %v548 = vld [vmem:[%s540 + $0x38] sm:$0xff]
    %v549 = vld [vmem:[%s540 + $0x40] sm:$0xff]
    %v550 = vld [vmem:[%s540 + $0x48] sm:$0xff]
    %v551 = vld [vmem:[%s540 + $0x50] sm:$0xff]
    %v552 = vld [vmem:[%s540 + $0x58] sm:$0xff]
    %s553 = scalar_lea.vmem %s7, 3
    %v554 = vld [vmem:[%s553] sm:$0x1]
    %v556 = vlaneseq
    %v557 = vshrl.u32 %v556, 7
    %v558 = vsub.s32 0, %v557
    %v559 = vrot.slane %v554, %v558
    %v562 = vsel %vm173, %v539, 0
    %564 = vmatprep.subr.mxu0 0.0
    %565 = vmatpush1.msra.mxu0 0.0
    %566 = vmatprep.subr.mxu0 0.0
    %567 = vmatpush1.msra.mxu0 0.0
    %568 = vmatprep.subr.mxu0 0.0
    %569 = vmatpush1.msra.mxu0 0.0
    %570 = vmatprep.subr.mxu0 0.0
    %571 = vmatpush1.msra.mxu0 0.0
    %572 = vmatprep.subr.mxu0 0.0
    %573 = vmatpush1.msra.mxu0 %v552
    %574 = vmatprep.subr.mxu0 0.0
    %575 = vmatpush1.msra.mxu0 %v551
    %576 = vmatprep.subr.mxu0 0.0
    %577 = vmatpush1.msra.mxu0 %v550
    %578 = vmatprep.subr.mxu0 0.0
    %579 = vmatpush1.msra.mxu0 %v549
    %580 = vmatprep.subr.mxu0 0.0
    %581 = vmatpush1.msra.mxu0 %v548
    %582 = vmatprep.subr.mxu0 0.0
    %583 = vmatpush1.msra.mxu0 %v547
    %584 = vmatprep.subr.mxu0 0.0
    %585 = vmatpush1.msra.mxu0 %v546
    %586 = vmatprep.subr.mxu0 0.0
    %587 = vmatpush1.msra.mxu0 %v545
    %588 = vmatprep.subr.mxu0 0.0
    %589 = vmatpush1.msra.mxu0 %v544
    %590 = vmatprep.subr.mxu0 0.0
    %591 = vmatpush1.msra.mxu0 %v543
    %592 = vmatprep.subr.mxu0 0.0
    %593 = vmatpush1.msra.mxu0 %v542
    %594 = vmatprep.subr.mxu0 0.0
    %595 = vmatpush1.msra.mxu0 %v541
    %596 = vmatprep.subr.mxu0 0.0
    %597 = vmatpush2.msra.mxu0 0.0
    %598 = vmatprep.subr.mxu0 0.0
    %599 = vmatpush2.msra.mxu0 0.0
    %600 = vmatprep.subr.mxu0 0.0
    %601 = vmatpush2.msra.mxu0 0.0
    %602 = vmatprep.subr.mxu0 0.0
    %603 = vmatpush2.msra.mxu0 0.0
    %604 = vmatprep.subr.mxu0 0.0
    %605 = vmatpush2.msra.mxu0 0.0
    %606 = vmatprep.subr.mxu0 0.0
    %607 = vmatpush2.msra.mxu0 0.0
    %608 = vmatprep.subr.mxu0 0.0
    %609 = vmatpush2.msra.mxu0 0.0
    %610 = vmatprep.subr.mxu0 0.0
    %611 = vmatpush2.msra.mxu0 0.0
    %612 = vmatprep.subr.mxu0 0.0
    %613 = vmatpush2.msra.mxu0 0.0
    %614 = vmatprep.subr.mxu0 0.0
    %615 = vmatpush2.msra.mxu0 0.0
    %616 = vmatprep.subr.mxu0 0.0
    %617 = vmatpush2.msra.mxu0 0.0
    %618 = vmatprep.subr.mxu0 0.0
    %619 = vmatpush2.msra.mxu0 0.0
    %620 = vmatprep.subr.mxu0 0.0
    %621 = vmatpush2.msra.mxu0 0.0
    %622 = vmatprep.subr.mxu0 0.0
    %623 = vmatpush2.msra.mxu0 0.0
    %624 = vmatprep.subr.mxu0 0.0
    %625 = vmatpush2.msra.mxu0 0.0
    %626 = vmatprep.subr.mxu0 0.0
    %627 = vmatpush2.msra.mxu0 0.0
    %628 = vmatprep.mubr.f32.mxu0 0.0
    %629 = vmatmul.mubr.f32.gmra.mxu0 %v562
    %v630 = vpop.f32.mrf.mxu0
    %v631 = vadd.f32 %v559, %v630
    %v632 = vpop.f32.mrf.mxu0
    %633 = vdwg.mxu0
    %v634 = vmax.f32 %v631, 0.0
    %v635 = vmul.f32 %v634, %v508
    %637 = vrot.lane.b32.xlu0 %v635, 96
    %v638 = vpop.permute.xlu0 %637
    %v640 = vadd.f32 %v635, %v638
    %641 = vrot.lane.b32.xlu0 %v635, 64
    %v642 = vpop.permute.xlu0 %641
    %v644 = vadd.f32 %v640, %v642
    %645 = vrot.lane.b32.xlu0 %v635, 32
    %v646 = vpop.permute.xlu0 %645
    %v648 = vadd.f32 %v644, %v646
    %v649 = vmul.f32 %v523, %v393
    %v650 = vadd.f32 %v648, %v649
    %v651 = vld [vmem:[%s4] sm:$0x1]
    %v652 = vld [vmem:[%s8] sm:$0xff]
    %v653 = vld [vmem:[%s8 + $0x8] sm:$0xff]
    %v654 = vld [vmem:[%s9] sm:$0x1]
    %vm655 = vcmask 130048
    %v657 = vsel %vm655, %v651, 0
    %659 = vmatprep.subr.mxu0 0.0
    %660 = vmatpush1.msra.mxu0 0.0
    %661 = vmatprep.subr.mxu0 0.0
    %662 = vmatpush1.msra.mxu0 0.0
    %663 = vmatprep.subr.mxu0 0.0
    %664 = vmatpush1.msra.mxu0 0.0
    %665 = vmatprep.subr.mxu0 0.0
    %666 = vmatpush1.msra.mxu0 0.0
    %667 = vmatprep.subr.mxu0 0.0
    %668 = vmatpush1.msra.mxu0 0.0
    %669 = vmatprep.subr.mxu0 0.0
    %670 = vmatpush1.msra.mxu0 0.0
    %671 = vmatprep.subr.mxu0 0.0
    %672 = vmatpush1.msra.mxu0 0.0
    %673 = vmatprep.subr.mxu0 0.0
    %674 = vmatpush1.msra.mxu0 0.0
    %675 = vmatprep.subr.mxu0 0.0
    %676 = vmatpush1.msra.mxu0 0.0
    %677 = vmatprep.subr.mxu0 0.0
    %678 = vmatpush1.msra.mxu0 0.0
    %679 = vmatprep.subr.mxu0 0.0
    %680 = vmatpush1.msra.mxu0 0.0
    %681 = vmatprep.subr.mxu0 0.0
    %682 = vmatpush1.msra.mxu0 0.0
    %683 = vmatprep.subr.mxu0 0.0
    %684 = vmatpush1.msra.mxu0 0.0
    %685 = vmatprep.subr.mxu0 0.0
    %686 = vmatpush1.msra.mxu0 0.0
    %687 = vmatprep.subr.mxu0 0.0
    %688 = vmatpush1.msra.mxu0 %v653
    %689 = vmatprep.subr.mxu0 0.0
    %690 = vmatpush1.msra.mxu0 %v652
    %691 = vmatprep.subr.mxu0 0.0
    %692 = vmatpush2.msra.mxu0 0.0
    %693 = vmatprep.subr.mxu0 0.0
    %694 = vmatpush2.msra.mxu0 0.0
    %695 = vmatprep.subr.mxu0 0.0
    %696 = vmatpush2.msra.mxu0 0.0
    %697 = vmatprep.subr.mxu0 0.0
    %698 = vmatpush2.msra.mxu0 0.0
    %699 = vmatprep.subr.mxu0 0.0
    %700 = vmatpush2.msra.mxu0 0.0
    %701 = vmatprep.subr.mxu0 0.0
    %702 = vmatpush2.msra.mxu0 0.0
    %703 = vmatprep.subr.mxu0 0.0
    %704 = vmatpush2.msra.mxu0 0.0
    %705 = vmatprep.subr.mxu0 0.0
    %706 = vmatpush2.msra.mxu0 0.0
    %707 = vmatprep.subr.mxu0 0.0
    %708 = vmatpush2.msra.mxu0 0.0
    %709 = vmatprep.subr.mxu0 0.0
    %710 = vmatpush2.msra.mxu0 0.0
    %711 = vmatprep.subr.mxu0 0.0
    %712 = vmatpush2.msra.mxu0 0.0
    %713 = vmatprep.subr.mxu0 0.0
    %714 = vmatpush2.msra.mxu0 0.0
    %715 = vmatprep.subr.mxu0 0.0
    %716 = vmatpush2.msra.mxu0 0.0
    %717 = vmatprep.subr.mxu0 0.0
    %718 = vmatpush2.msra.mxu0 0.0
    %719 = vmatprep.subr.mxu0 0.0
    %720 = vmatpush2.msra.mxu0 0.0
    %721 = vmatprep.subr.mxu0 0.0
    %722 = vmatpush2.msra.mxu0 0.0
    %723 = vmatprep.mubr.f32.mxu0 0.0
    %724 = vmatmul.mubr.f32.gmra.mxu0 %v657
    %v725 = vpop.f32.mrf.mxu0
    %v726 = vadd.f32 %v654, %v725
    %v727 = vpop.f32.mrf.mxu0
    %728 = vdwg.mxu0
    %v729 = vld [vmem:[%s10] sm:$0xff]
    %v730 = vld [vmem:[%s10 + $0x8] sm:$0xff]
    %v731 = vld [vmem:[%s10 + $0x10] sm:$0xff]
    %v732 = vld [vmem:[%s10 + $0x18] sm:$0xff]
    %v733 = vld [vmem:[%s11] sm:$0x1]
    %v735 = vsel %vm150, %v726, 0
    %737 = vmatprep.subr.mxu0 0.0
    %738 = vmatpush1.msra.mxu0 0.0
    %739 = vmatprep.subr.mxu0 0.0
    %740 = vmatpush1.msra.mxu0 0.0
    %741 = vmatprep.subr.mxu0 0.0
    %742 = vmatpush1.msra.mxu0 0.0
    %743 = vmatprep.subr.mxu0 0.0
    %744 = vmatpush1.msra.mxu0 0.0
    %745 = vmatprep.subr.mxu0 0.0
    %746 = vmatpush1.msra.mxu0 0.0
    %747 = vmatprep.subr.mxu0 0.0
    %748 = vmatpush1.msra.mxu0 0.0
    %749 = vmatprep.subr.mxu0 0.0
    %750 = vmatpush1.msra.mxu0 0.0
    %751 = vmatprep.subr.mxu0 0.0
    %752 = vmatpush1.msra.mxu0 0.0
    %753 = vmatprep.subr.mxu0 0.0
    %754 = vmatpush1.msra.mxu0 0.0
    %755 = vmatprep.subr.mxu0 0.0
    %756 = vmatpush1.msra.mxu0 0.0
    %757 = vmatprep.subr.mxu0 0.0
    %758 = vmatpush1.msra.mxu0 0.0
    %759 = vmatprep.subr.mxu0 0.0
    %760 = vmatpush1.msra.mxu0 0.0
    %761 = vmatprep.subr.mxu0 0.0
    %762 = vmatpush1.msra.mxu0 %v732
    %763 = vmatprep.subr.mxu0 0.0
    %764 = vmatpush1.msra.mxu0 %v731
    %765 = vmatprep.subr.mxu0 0.0
    %766 = vmatpush1.msra.mxu0 %v730
    %767 = vmatprep.subr.mxu0 0.0
    %768 = vmatpush1.msra.mxu0 %v729
    %769 = vmatprep.subr.mxu0 0.0
    %770 = vmatpush2.msra.mxu0 0.0
    %771 = vmatprep.subr.mxu0 0.0
    %772 = vmatpush2.msra.mxu0 0.0
    %773 = vmatprep.subr.mxu0 0.0
    %774 = vmatpush2.msra.mxu0 0.0
    %775 = vmatprep.subr.mxu0 0.0
    %776 = vmatpush2.msra.mxu0 0.0
    %777 = vmatprep.subr.mxu0 0.0
    %778 = vmatpush2.msra.mxu0 0.0
    %779 = vmatprep.subr.mxu0 0.0
    %780 = vmatpush2.msra.mxu0 0.0
    %781 = vmatprep.subr.mxu0 0.0
    %782 = vmatpush2.msra.mxu0 0.0
    %783 = vmatprep.subr.mxu0 0.0
    %784 = vmatpush2.msra.mxu0 0.0
    %785 = vmatprep.subr.mxu0 0.0
    %786 = vmatpush2.msra.mxu0 0.0
    %787 = vmatprep.subr.mxu0 0.0
    %788 = vmatpush2.msra.mxu0 0.0
    %789 = vmatprep.subr.mxu0 0.0
    %790 = vmatpush2.msra.mxu0 0.0
    %791 = vmatprep.subr.mxu0 0.0
    %792 = vmatpush2.msra.mxu0 0.0
    %793 = vmatprep.subr.mxu0 0.0
    %794 = vmatpush2.msra.mxu0 0.0
    %795 = vmatprep.subr.mxu0 0.0
    %796 = vmatpush2.msra.mxu0 0.0
    %797 = vmatprep.subr.mxu0 0.0
    %798 = vmatpush2.msra.mxu0 0.0
    %799 = vmatprep.subr.mxu0 0.0
    %800 = vmatpush2.msra.mxu0 0.0
    %801 = vmatprep.mubr.f32.mxu0 0.0
    %802 = vmatmul.mubr.f32.gmra.mxu0 %v735
    %v803 = vpop.f32.mrf.mxu0
    %v804 = vadd.f32 %v733, %v803
    %v805 = vpop.f32.mrf.mxu0
    %806 = vdwg.mxu0
    %v807 = vmax.f32 %v804, 0.0
    %808 = vrot.lane.b32.xlu0 %v726, 64
    %v809 = vpop.permute.xlu0 %808
    %v811 = vmul.f32 %v807, %v809
    %v812 = vld [vmem:[#allocation10] sm:$0xff]
    %v813 = vld [vmem:[#allocation10 + $0x8] sm:$0xff]
    %v814 = vld [vmem:[#allocation10 + $0x10] sm:$0xff]
    %v815 = vld [vmem:[#allocation10 + $0x18] sm:$0xff]
    %v816 = vld [vmem:[%s13] sm:$0x1]
    %818 = vrot.lane.b32.xlu0 %v811, 64
    %v819 = vpop.permute.xlu0 %818
    %v820 = vsel %vm150, %v819, 0
    %822 = vmatprep.subr.mxu0 0.0
    %823 = vmatpush1.msra.mxu0 0.0
    %824 = vmatprep.subr.mxu0 0.0
    %825 = vmatpush1.msra.mxu0 0.0
    %826 = vmatprep.subr.mxu0 0.0
    %827 = vmatpush1.msra.mxu0 0.0
    %828 = vmatprep.subr.mxu0 0.0
    %829 = vmatpush1.msra.mxu0 0.0
    %830 = vmatprep.subr.mxu0 0.0
    %831 = vmatpush1.msra.mxu0 0.0
    %832 = vmatprep.subr.mxu0 0.0
    %833 = vmatpush1.msra.mxu0 0.0
    %834 = vmatprep.subr.mxu0 0.0
    %835 = vmatpush1.msra.mxu0 0.0
    %836 = vmatprep.subr.mxu0 0.0
    %837 = vmatpush1.msra.mxu0 0.0
    %838 = vmatprep.subr.mxu0 0.0
    %839 = vmatpush1.msra.mxu0 0.0
    %840 = vmatprep.subr.mxu0 0.0
    %841 = vmatpush1.msra.mxu0 0.0
    %842 = vmatprep.subr.mxu0 0.0
    %843 = vmatpush1.msra.mxu0 0.0
    %844 = vmatprep.subr.mxu0 0.0
    %845 = vmatpush1.msra.mxu0 0.0
    %846 = vmatprep.subr.mxu0 0.0
    %847 = vmatpush1.msra.mxu0 %v815
    %848 = vmatprep.subr.mxu0 0.0
    %849 = vmatpush1.msra.mxu0 %v814
    %850 = vmatprep.subr.mxu0 0.0
    %851 = vmatpush1.msra.mxu0 %v813
    %852 = vmatprep.subr.mxu0 0.0
    %853 = vmatpush1.msra.mxu0 %v812
    %854 = vmatprep.subr.mxu0 0.0
    %855 = vmatpush2.msra.mxu0 0.0
    %856 = vmatprep.subr.mxu0 0.0
    %857 = vmatpush2.msra.mxu0 0.0
    %858 = vmatprep.subr.mxu0 0.0
    %859 = vmatpush2.msra.mxu0 0.0
    %860 = vmatprep.subr.mxu0 0.0
    %861 = vmatpush2.msra.mxu0 0.0
    %862 = vmatprep.subr.mxu0 0.0
    %863 = vmatpush2.msra.mxu0 0.0
    %864 = vmatprep.subr.mxu0 0.0
    %865 = vmatpush2.msra.mxu0 0.0
    %866 = vmatprep.subr.mxu0 0.0
    %867 = vmatpush2.msra.mxu0 0.0
    %868 = vmatprep.subr.mxu0 0.0
    %869 = vmatpush2.msra.mxu0 0.0
    %870 = vmatprep.subr.mxu0 0.0
    %871 = vmatpush2.msra.mxu0 0.0
    %872 = vmatprep.subr.mxu0 0.0
    %873 = vmatpush2.msra.mxu0 0.0
    %874 = vmatprep.subr.mxu0 0.0
    %875 = vmatpush2.msra.mxu0 0.0
    %876 = vmatprep.subr.mxu0 0.0
    %877 = vmatpush2.msra.mxu0 0.0
    %878 = vmatprep.subr.mxu0 0.0
    %879 = vmatpush2.msra.mxu0 0.0
    %880 = vmatprep.subr.mxu0 0.0
    %881 = vmatpush2.msra.mxu0 0.0
    %882 = vmatprep.subr.mxu0 0.0
    %883 = vmatpush2.msra.mxu0 0.0
    %884 = vmatprep.subr.mxu0 0.0
    %885 = vmatpush2.msra.mxu0 0.0
    %886 = vmatprep.mubr.f32.mxu0 0.0
    %887 = vmatmul.mubr.f32.gmra.mxu0 %v820
    %v888 = vpop.f32.mrf.mxu0
    %v889 = vadd.f32 %v816, %v888
    %v890 = vpop.f32.mrf.mxu0
    %891 = vdwg.mxu0
    %v892 = vmax.f32 %v889, 0.0
    %s893 = sld [smem:[#allocation8]]
    %v894 = vstv %s893
    %v895 = vmul.f32 %v894, %v807
    %s896 = sld [smem:[#allocation8 + $0x1]]
    %v897 = vstv %s896
    %v898 = vmul.f32 %v897, %v807
    %900 = vrot.lane.b32.xlu0 %v898, 96
    %v901 = vpop.permute.xlu0 %900
    %v903 = vadd.f32 %v895, %v901
    %s904 = sld [smem:[#allocation8 + $0x2]]
    %v905 = vstv %s904
    %v906 = vmul.f32 %v905, %v892
    %v907 = vadd.f32 %v903, %v906
    %s908 = scalar_lea.vmem %s10, 32
    %v909 = vld [vmem:[%s908] sm:$0xff]
    %v910 = vld [vmem:[%s908 + $0x8] sm:$0xff]
    %v911 = vld [vmem:[%s908 + $0x10] sm:$0xff]
    %v912 = vld [vmem:[%s908 + $0x18] sm:$0xff]
    %s913 = scalar_lea.vmem %s11, 1
    %v914 = vld [vmem:[%s913] sm:$0x1]
    %v916 = vsel %vm150, %v907, 0
    %918 = vmatprep.subr.mxu0 0.0
    %919 = vmatpush1.msra.mxu0 0.0
    %920 = vmatprep.subr.mxu0 0.0
    %921 = vmatpush1.msra.mxu0 0.0
    %922 = vmatprep.subr.mxu0 0.0
    %923 = vmatpush1.msra.mxu0 0.0
    %924 = vmatprep.subr.mxu0 0.0
    %925 = vmatpush1.msra.mxu0 0.0
    %926 = vmatprep.subr.mxu0 0.0
    %927 = vmatpush1.msra.mxu0 0.0
    %928 = vmatprep.subr.mxu0 0.0
    %929 = vmatpush1.msra.mxu0 0.0
    %930 = vmatprep.subr.mxu0 0.0
    %931 = vmatpush1.msra.mxu0 0.0
    %932 = vmatprep.subr.mxu0 0.0
    %933 = vmatpush1.msra.mxu0 0.0
    %934 = vmatprep.subr.mxu0 0.0
    %935 = vmatpush1.msra.mxu0 0.0
    %936 = vmatprep.subr.mxu0 0.0
    %937 = vmatpush1.msra.mxu0 0.0
    %938 = vmatprep.subr.mxu0 0.0
    %939 = vmatpush1.msra.mxu0 0.0
    %940 = vmatprep.subr.mxu0 0.0
    %941 = vmatpush1.msra.mxu0 0.0
    %942 = vmatprep.subr.mxu0 0.0
    %943 = vmatpush1.msra.mxu0 %v912
    %944 = vmatprep.subr.mxu0 0.0
    %945 = vmatpush1.msra.mxu0 %v911
    %946 = vmatprep.subr.mxu0 0.0
    %947 = vmatpush1.msra.mxu0 %v910
    %948 = vmatprep.subr.mxu0 0.0
    %949 = vmatpush1.msra.mxu0 %v909
    %950 = vmatprep.subr.mxu0 0.0
    %951 = vmatpush2.msra.mxu0 0.0
    %952 = vmatprep.subr.mxu0 0.0
    %953 = vmatpush2.msra.mxu0 0.0
    %954 = vmatprep.subr.mxu0 0.0
    %955 = vmatpush2.msra.mxu0 0.0
    %956 = vmatprep.subr.mxu0 0.0
    %957 = vmatpush2.msra.mxu0 0.0
    %958 = vmatprep.subr.mxu0 0.0
    %959 = vmatpush2.msra.mxu0 0.0
    %960 = vmatprep.subr.mxu0 0.0
    %961 = vmatpush2.msra.mxu0 0.0
    %962 = vmatprep.subr.mxu0 0.0
    %963 = vmatpush2.msra.mxu0 0.0
    %964 = vmatprep.subr.mxu0 0.0
    %965 = vmatpush2.msra.mxu0 0.0
    %966 = vmatprep.subr.mxu0 0.0
    %967 = vmatpush2.msra.mxu0 0.0
    %968 = vmatprep.subr.mxu0 0.0
    %969 = vmatpush2.msra.mxu0 0.0
    %970 = vmatprep.subr.mxu0 0.0
    %971 = vmatpush2.msra.mxu0 0.0
    %972 = vmatprep.subr.mxu0 0.0
    %973 = vmatpush2.msra.mxu0 0.0
    %974 = vmatprep.subr.mxu0 0.0
    %975 = vmatpush2.msra.mxu0 0.0
    %976 = vmatprep.subr.mxu0 0.0
    %977 = vmatpush2.msra.mxu0 0.0
    %978 = vmatprep.subr.mxu0 0.0
    %979 = vmatpush2.msra.mxu0 0.0
    %980 = vmatprep.subr.mxu0 0.0
    %981 = vmatpush2.msra.mxu0 0.0
    %982 = vmatprep.mubr.f32.mxu0 0.0
    %983 = vmatmul.mubr.f32.gmra.mxu0 %v916
    %v984 = vpop.f32.mrf.mxu0
    %v985 = vadd.f32 %v914, %v984
    %v986 = vpop.f32.mrf.mxu0
    %987 = vdwg.mxu0
    %v988 = vmax.f32 %v985, 0.0
    %989 = vrot.lane.b32.xlu0 %v907, 64
    %v990 = vpop.permute.xlu0 %989
    %v992 = vmul.f32 %v988, %v990
    %s993 = scalar_lea.vmem [#allocation10], 32
    %v994 = vld [vmem:[%s993] sm:$0xff]
    %v995 = vld [vmem:[%s993 + $0x8] sm:$0xff]
    %v996 = vld [vmem:[%s993 + $0x10] sm:$0xff]
    %v997 = vld [vmem:[%s993 + $0x18] sm:$0xff]
    %s998 = scalar_lea.vmem %s13, 1
    %v999 = vld [vmem:[%s998] sm:$0x1]
    %1001 = vrot.lane.b32.xlu0 %v992, 64
    %v1002 = vpop.permute.xlu0 %1001
    %v1003 = vsel %vm150, %v1002, 0
    %1005 = vmatprep.subr.mxu0 0.0
    %1006 = vmatpush1.msra.mxu0 0.0
    %1007 = vmatprep.subr.mxu0 0.0
    %1008 = vmatpush1.msra.mxu0 0.0
    %1009 = vmatprep.subr.mxu0 0.0
    %1010 = vmatpush1.msra.mxu0 0.0
    %1011 = vmatprep.subr.mxu0 0.0
    %1012 = vmatpush1.msra.mxu0 0.0
    %1013 = vmatprep.subr.mxu0 0.0
    %1014 = vmatpush1.msra.mxu0 0.0
    %1015 = vmatprep.subr.mxu0 0.0
    %1016 = vmatpush1.msra.mxu0 0.0
    %1017 = vmatprep.subr.mxu0 0.0
    %1018 = vmatpush1.msra.mxu0 0.0
    %1019 = vmatprep.subr.mxu0 0.0
    %1020 = vmatpush1.msra.mxu0 0.0
    %1021 = vmatprep.subr.mxu0 0.0
    %1022 = vmatpush1.msra.mxu0 0.0
    %1023 = vmatprep.subr.mxu0 0.0
    %1024 = vmatpush1.msra.mxu0 0.0
    %1025 = vmatprep.subr.mxu0 0.0
    %1026 = vmatpush1.msra.mxu0 0.0
    %1027 = vmatprep.subr.mxu0 0.0
    %1028 = vmatpush1.msra.mxu0 0.0
    %1029 = vmatprep.subr.mxu0 0.0
    %1030 = vmatpush1.msra.mxu0 %v997
    %1031 = vmatprep.subr.mxu0 0.0
    %1032 = vmatpush1.msra.mxu0 %v996
    %1033 = vmatprep.subr.mxu0 0.0
    %1034 = vmatpush1.msra.mxu0 %v995
    %1035 = vmatprep.subr.mxu0 0.0
    %1036 = vmatpush1.msra.mxu0 %v994
    %1037 = vmatprep.subr.mxu0 0.0
    %1038 = vmatpush2.msra.mxu0 0.0
    %1039 = vmatprep.subr.mxu0 0.0
    %1040 = vmatpush2.msra.mxu0 0.0
    %1041 = vmatprep.subr.mxu0 0.0
    %1042 = vmatpush2.msra.mxu0 0.0
    %1043 = vmatprep.subr.mxu0 0.0
    %1044 = vmatpush2.msra.mxu0 0.0
    %1045 = vmatprep.subr.mxu0 0.0
    %1046 = vmatpush2.msra.mxu0 0.0
    %1047 = vmatprep.subr.mxu0 0.0
    %1048 = vmatpush2.msra.mxu0 0.0
    %1049 = vmatprep.subr.mxu0 0.0
    %1050 = vmatpush2.msra.mxu0 0.0
    %1051 = vmatprep.subr.mxu0 0.0
    %1052 = vmatpush2.msra.mxu0 0.0
    %1053 = vmatprep.subr.mxu0 0.0
    %1054 = vmatpush2.msra.mxu0 0.0
    %1055 = vmatprep.subr.mxu0 0.0
    %1056 = vmatpush2.msra.mxu0 0.0
    %1057 = vmatprep.subr.mxu0 0.0
    %1058 = vmatpush2.msra.mxu0 0.0
    %1059 = vmatprep.subr.mxu0 0.0
    %1060 = vmatpush2.msra.mxu0 0.0
    %1061 = vmatprep.subr.mxu0 0.0
    %1062 = vmatpush2.msra.mxu0 0.0
    %1063 = vmatprep.subr.mxu0 0.0
    %1064 = vmatpush2.msra.mxu0 0.0
    %1065 = vmatprep.subr.mxu0 0.0
    %1066 = vmatpush2.msra.mxu0 0.0
    %1067 = vmatprep.subr.mxu0 0.0
    %1068 = vmatpush2.msra.mxu0 0.0
    %1069 = vmatprep.mubr.f32.mxu0 0.0
    %1070 = vmatmul.mubr.f32.gmra.mxu0 %v1003
    %v1071 = vpop.f32.mrf.mxu0
    %v1072 = vadd.f32 %v999, %v1071
    %v1073 = vpop.f32.mrf.mxu0
    %1074 = vdwg.mxu0
    %v1075 = vmax.f32 %v1072, 0.0
    %s1076 = sld [smem:[#allocation8 + $0x80]]
    %v1077 = vstv %s1076
    %v1078 = vmul.f32 %v1077, %v988
    %s1079 = sld [smem:[#allocation8 + $0x81]]
    %v1080 = vstv %s1079
    %v1081 = vmul.f32 %v1080, %v988
    %1083 = vrot.lane.b32.xlu0 %v1081, 96
    %v1084 = vpop.permute.xlu0 %1083
    %v1086 = vadd.f32 %v1078, %v1084
    %s1087 = sld [smem:[#allocation8 + $0x82]]
    %v1088 = vstv %s1087
    %v1089 = vmul.f32 %v1088, %v1075
    %v1090 = vadd.f32 %v1086, %v1089
    %v1091 = vsel %vm150, %v525, 0.0
    %v1092 = vrot.slane %v1091, 4
    %v1093 = vadd.f32 %v1091, %v1092
    %v1094 = vrot.slane %v1093, 2
    %v1095 = vadd.f32 %v1093, %v1094
    %v1096 = vrot.slane %v1095, 1
    %v1097 = vadd.f32 %v1095, %v1096
    %v1098 = vsel %vm150, %v525, -inf
    %v1099 = vrot.slane %v1098, 4
    %v1100 = vmax.f32 %v1098, %v1099
    %v1101 = vrot.slane %v1100, 2
    %v1102 = vmax.f32 %v1100, %v1101
    %v1103 = vrot.slane %v1102, 1
    %v1104 = vmax.f32 %v1102, %v1103
    %v1105 = vsel %vm150, %v650, 0.0
    %v1106 = vrot.slane %v1105, 4
    %v1107 = vadd.f32 %v1105, %v1106
    %v1108 = vrot.slane %v1107, 2
    %v1109 = vadd.f32 %v1107, %v1108
    %v1110 = vrot.slane %v1109, 1
    %v1111 = vadd.f32 %v1109, %v1110
    %v1112 = vadd.f32 %v1097, %v1111
    %v1113 = vsel %vm150, %v650, -inf
    %v1114 = vrot.slane %v1113, 4
    %v1115 = vmax.f32 %v1113, %v1114
    %v1116 = vrot.slane %v1115, 2
    %v1117 = vmax.f32 %v1115, %v1116
    %v1118 = vrot.slane %v1117, 1
    %v1119 = vmax.f32 %v1117, %v1118
    %v1120 = vmax.f32 %v1104, %v1119
    %s1121 = sld [smem:[#allocation6]]
    %s1122 = sld [smem:[#allocation6 + $0x1]]
    %s1123 = smul.f32 %s1122, 0.0625
    %s1124 = sadd.f32 %s1121, %s1123
    %v1125 = vstv %s1124
    %v1126 = vmul.f32 %v1125, %v1112
    %s1127 = sld [smem:[#allocation6 + $0x2]]
    %v1128 = vstv %s1127
    %v1129 = vmul.f32 %v1128, %v1120
    %v1130 = vadd.f32 %v1126, %v1129
    %v1131 = vadd.f32 %v1130, %v1090
    %v1132 = vld [vmem:[%s14] sm:$0xff]
    %v1133 = vld [vmem:[%s14 + $0x8] sm:$0xff]
    %v1134 = vld [vmem:[%s14 + $0x10] sm:$0xff]
    %v1135 = vld [vmem:[%s14 + $0x18] sm:$0xff]
    %v1136 = vld [vmem:[#allocation12] sm:$0x1]
    %v1138 = vsel %vm150, %v1131, 0
    %1140 = vmatprep.subr.mxu0 0.0
    %1141 = vmatpush1.msra.mxu0 0.0
    %1142 = vmatprep.subr.mxu0 0.0
    %1143 = vmatpush1.msra.mxu0 0.0
    %1144 = vmatprep.subr.mxu0 0.0
    %1145 = vmatpush1.msra.mxu0 0.0
    %1146 = vmatprep.subr.mxu0 0.0
    %1147 = vmatpush1.msra.mxu0 0.0
    %1148 = vmatprep.subr.mxu0 0.0
    %1149 = vmatpush1.msra.mxu0 0.0
    %1150 = vmatprep.subr.mxu0 0.0
    %1151 = vmatpush1.msra.mxu0 0.0
    %1152 = vmatprep.subr.mxu0 0.0
    %1153 = vmatpush1.msra.mxu0 0.0
    %1154 = vmatprep.subr.mxu0 0.0
    %1155 = vmatpush1.msra.mxu0 0.0
    %1156 = vmatprep.subr.mxu0 0.0
    %1157 = vmatpush1.msra.mxu0 0.0
    %1158 = vmatprep.subr.mxu0 0.0
    %1159 = vmatpush1.msra.mxu0 0.0
    %1160 = vmatprep.subr.mxu0 0.0
    %1161 = vmatpush1.msra.mxu0 0.0
    %1162 = vmatprep.subr.mxu0 0.0
    %1163 = vmatpush1.msra.mxu0 0.0
    %1164 = vmatprep.subr.mxu0 0.0
    %1165 = vmatpush1.msra.mxu0 %v1135
    %1166 = vmatprep.subr.mxu0 0.0
    %1167 = vmatpush1.msra.mxu0 %v1134
    %1168 = vmatprep.subr.mxu0 0.0
    %1169 = vmatpush1.msra.mxu0 %v1133
    %1170 = vmatprep.subr.mxu0 0.0
    %1171 = vmatpush1.msra.mxu0 %v1132
    %1172 = vmatprep.subr.mxu0 0.0
    %1173 = vmatpush2.msra.mxu0 0.0
    %1174 = vmatprep.subr.mxu0 0.0
    %1175 = vmatpush2.msra.mxu0 0.0
    %1176 = vmatprep.subr.mxu0 0.0
    %1177 = vmatpush2.msra.mxu0 0.0
    %1178 = vmatprep.subr.mxu0 0.0
    %1179 = vmatpush2.msra.mxu0 0.0
    %1180 = vmatprep.subr.mxu0 0.0
    %1181 = vmatpush2.msra.mxu0 0.0
    %1182 = vmatprep.subr.mxu0 0.0
    %1183 = vmatpush2.msra.mxu0 0.0
    %1184 = vmatprep.subr.mxu0 0.0
    %1185 = vmatpush2.msra.mxu0 0.0
    %1186 = vmatprep.subr.mxu0 0.0
    %1187 = vmatpush2.msra.mxu0 0.0
    %1188 = vmatprep.subr.mxu0 0.0
    %1189 = vmatpush2.msra.mxu0 0.0
    %1190 = vmatprep.subr.mxu0 0.0
    %1191 = vmatpush2.msra.mxu0 0.0
    %1192 = vmatprep.subr.mxu0 0.0
    %1193 = vmatpush2.msra.mxu0 0.0
    %1194 = vmatprep.subr.mxu0 0.0
    %1195 = vmatpush2.msra.mxu0 0.0
    %1196 = vmatprep.subr.mxu0 0.0
    %1197 = vmatpush2.msra.mxu0 0.0
    %1198 = vmatprep.subr.mxu0 0.0
    %1199 = vmatpush2.msra.mxu0 0.0
    %1200 = vmatprep.subr.mxu0 0.0
    %1201 = vmatpush2.msra.mxu0 0.0
    %1202 = vmatprep.subr.mxu0 0.0
    %1203 = vmatpush2.msra.mxu0 0.0
    %1204 = vmatprep.mubr.f32.mxu0 0.0
    %1205 = vmatmul.mubr.f32.gmra.mxu0 %v1138
    %v1206 = vpop.f32.mrf.mxu0
    %v1207 = vadd.f32 %v1136, %v1206
    %v1208 = vpop.f32.mrf.mxu0
    %1209 = vdwg.mxu0
    %vm1210 = vcmask 24576
    %1211 = vst.msk [vmem:[#allocation13] sm:$0x1] %vm1210, %v1207
    // Predicated region
    $region90: #{search_network_forward.1} parent=1 // pred_check
      _
    $region91: #{search_network_forward.1} parent=1 // pred_check_branch
      %1213 = sbr.rel (0) target = $region93
    $region92: #{search_network_forward.1} parent=1 // pred_region
      %s1215 = ssub.s32 16, 16
      %1216 = vsyncadd [#allocation4], %s1215
      %s1218 = sshll.u32 [#allocation13], 4
      %s1219 = int_to_ptr.vmem [resolvable:$true] %s1218
      %1221 = dma.vmem_to_hbm [thread:$0]  %s1219, 16, %s16, [#allocation4]
    $region93: #{search_network_forward.1} parent=1 // pred_fallthru
      _
    // Predicated region
    $region94: #{search_network_forward.1} parent=1 // pred_check
      _
    $region95: #{search_network_forward.1} parent=1 // pred_check_branch
      %1223 = sbr.rel (0) target = $region97
    $region96: #{search_network_forward.1} parent=1 // pred_region
      %1224 = dma.done [#allocation4], 16
    $region97: #{search_network_forward.1} parent=1 // pred_fallthru
      _
    %1225 = vsyncpa [#allocation3], 1
    %1226 = vsyncpa [#allocation11], 1
    %1227 = vsyncpa [#allocation4], 1
    %1228 = vsyncpa [#allocation5], 1
    %1229 = vsyncpa [#allocation7], 1

</llo_original>
